<compile_context>
chip_gen: v7x
topology: tpu7x:2x2x1
jax: 0.10.0
libtpu: 0.0.40
codegen_flags: <defaults>
</compile_context>

<pallas_src>
import math
import functools

import numpy as np
import jax
import jax.numpy as jnp
from jax.experimental import pallas as pl
from jax.experimental.pallas import tpu as pltpu


# -----------------------------------------------------------------------------
# Generation-gated tiling constants (v5e/v6e: 128 MiB VMEM, v7x: 64 MiB per TC)
# -----------------------------------------------------------------------------
def _vmem_capacity_bytes():
    try:
        info = pltpu.get_tpu_info()
        cap = getattr(info, "vmem_capacity_bytes", None)
        if cap:
            return int(cap)
    except Exception:
        pass
    return 64 * 1024 * 1024  # conservative fallback (v7x per-core VMEM)


_VMEM_CAP = _vmem_capacity_bytes()
if _VMEM_CAP >= 96 * 1024 * 1024:           # v5e / v6e (128 MiB physical VMEM)
    VMEM_LIMIT_BYTES = 96 * 1024 * 1024
    TILE_M = 2048
else:                                        # v7x (64 MiB per TensorCore)
    VMEM_LIMIT_BYTES = 40 * 1024 * 1024
    TILE_M = 1024
TILE_Q = 512                                 # q-row tile for the attention grid

# Cl(1,3) blade bookkeeping. Blade order:
# [1, e0,e1,e2,e3, e01,e02,e03,e12,e13,e23, e012,e013,e023,e123, e0123]
BLADE_GRADES = [0] + [1] * 4 + [2] * 6 + [3] * 4 + [4]
NUM_GRADES = 5
# <rev(eI) eI>_0 with Minkowski metric (+,-,-,-): signs of the invariant
# inner product used inside geometric attention.
IP_SIGNS = [1.0,
            1.0, -1.0, -1.0, -1.0,
            -1.0, -1.0, -1.0, 1.0, 1.0, 1.0,
            1.0, 1.0, 1.0, -1.0,
            -1.0]


def grade_mask():
    return jnp.asarray([[1.0 if BLADE_GRADES[x] == g else 0.0 for x in range(16)]
                        for g in range(NUM_GRADES)], jnp.float32)


def _mxu_dot(a, b, *, precise, dims=None):
    """MXU matmul with f32 accumulation.

    Fast path: bf16 operands (the MXU's native datapath on v5e/v6e/v7x).
    Precise path (debug / correctness gate only): f32 operands, HIGHEST.
    """
    if dims is None:
        dims = (((a.ndim - 1,), (0,)), ((), ()))
    if precise:
        return jax.lax.dot_general(a, b, dims,
                                   precision=jax.lax.Precision.HIGHEST,
                                   preferred_element_type=jnp.float32)
    return jax.lax.dot_general(a.astype(jnp.bfloat16), b.astype(jnp.bfloat16),
                               dims, preferred_element_type=jnp.float32)


# -----------------------------------------------------------------------------
# Pallas kernels
# -----------------------------------------------------------------------------
def fused_linear2_kernel(xm_ref, xs_ref, wm_ref, ws_ref, b_ref, y_ref, *, precise):
    """EquiLinear tile with the [mv | scalars] concat fused as two dots."""
    acc = _mxu_dot(xm_ref[...], wm_ref[...], precise=precise)
    acc = acc + _mxu_dot(xs_ref[...], ws_ref[...], precise=precise)
    y_ref[...] = acc + b_ref[...]


def fused_linear1_kernel(x_ref, w_ref, b_ref, y_ref, *, precise):
    """Single-input fused EquiLinear tile (output projection)."""
    y_ref[...] = _mxu_dot(x_ref[...], w_ref[...], precise=precise) + b_ref[...]


def geometric_attention_kernel(q_ref, kv_ref, o_ref, *, num_heads, head_dim,
                               precise):
    """One (batch, q-tile) step, all heads: dot - softmax - dot.

    q_ref:  (1, TQ,  H*D)   head-major columns, signs & 1/sqrt(D) pre-folded
    kv_ref: (1, Nkv, 2*H*D) [K heads | V heads], head_scale pre-folded into V
    o_ref:  (1, TQ,  H*D)   lane-dense slab, one wide store
    """
    D = head_dim
    outs = []
    for h in range(num_heads):
        # Static ref column slices: only the needed window is loaded.
        q = q_ref[0, :, h * D:(h + 1) * D]                                  # (TQ, D)
        k = kv_ref[0, :, h * D:(h + 1) * D]                                 # (Nkv, D)
        v = kv_ref[0, :, (num_heads + h) * D:(num_heads + h + 1) * D]       # (Nkv, D)

        logits = _mxu_dot(q, k, dims=(((1,), (1,)), ((), ())),
                          precise=precise)                                  # (TQ, Nkv)
        m = jnp.max(logits, axis=-1, keepdims=True)
        p = jnp.exp(logits - m)
        denom = jnp.sum(p, axis=-1, keepdims=True)                          # (TQ, 1)
        num = _mxu_dot(p, v, precise=precise)                               # (TQ, D)
        # Normalize on the small (TQ, D) slab; approx recip -> EUP slot.
        outs.append(num * pl.reciprocal(denom, approx=not precise))
    # Assemble the head-major slab in-register -> one lane-dense store.
    o_ref[0] = jnp.concatenate(outs, axis=-1)
    # TODO(synk): for very long Nkv, tile Nkv here with an online softmax
    # (running max + running denominator) instead of full-row logits.


# -----------------------------------------------------------------------------
# Pallas wrappers
# -----------------------------------------------------------------------------
def fused_linear2(x_mv, x_s, w_mv, w_s, b, *, precise):
    """y = x_mv @ w_mv + x_s @ w_s + b, M-tiled parallel grid, resident weights."""
    M, Km = x_mv.shape
    Ks = x_s.shape[1]
    N = w_mv.shape[1]
    tm = M if M <= TILE_M else TILE_M
    return pl.pallas_call(
        functools.partial(fused_linear2_kernel, precise=precise),
        out_shape=jax.ShapeDtypeStruct((M, N), jnp.float32),
        grid=(pl.cdiv(M, tm),),
        in_specs=[pl.BlockSpec((tm, Km), lambda i: (i, 0)),
                  pl.BlockSpec((tm, Ks), lambda i: (i, 0)),
                  pl.BlockSpec((Km, N), lambda i: (0, 0)),   # resident weights
                  pl.BlockSpec((Ks, N), lambda i: (0, 0)),
                  pl.BlockSpec((1, N), lambda i: (0, 0))],
        out_specs=pl.BlockSpec((tm, N), lambda i: (i, 0)),
        compiler_params=pltpu.CompilerParams(
            dimension_semantics=("parallel",),
            vmem_limit_bytes=VMEM_LIMIT_BYTES),
    )(x_mv, x_s, w_mv, w_s, b)


def fused_linear1(x, w, b, *, precise):
    """y = x @ w + b, M-tiled parallel grid, resident weights."""
    M, K = x.shape
    N = w.shape[1]
    tm = M if M <= TILE_M else TILE_M
    return pl.pallas_call(
        functools.partial(fused_linear1_kernel, precise=precise),
        out_shape=jax.ShapeDtypeStruct((M, N), jnp.float32),
        grid=(pl.cdiv(M, tm),),
        in_specs=[pl.BlockSpec((tm, K), lambda i: (i, 0)),
                  pl.BlockSpec((K, N), lambda i: (0, 0)),
                  pl.BlockSpec((1, N), lambda i: (0, 0))],
        out_specs=pl.BlockSpec((tm, N), lambda i: (i, 0)),
        compiler_params=pltpu.CompilerParams(
            dimension_semantics=("parallel",),
            vmem_limit_bytes=VMEM_LIMIT_BYTES),
    )(x, w, b)


def geometric_attention(qf, kvf, *, num_heads, head_dim, precise):
    """qf: (B, Nq, H*D), kvf: (B, Nkv, 2*H*D) -> (B, Nq, H*D), lane-dense."""
    B, Nq, HD = qf.shape
    Nkv = kvf.shape[1]
    tq = Nq if Nq <= TILE_Q else TILE_Q
    # TODO(synk): on v7x with tiny B, also shard heads across the grid so both
    # TensorCores stay busy.
    return pl.pallas_call(
        functools.partial(geometric_attention_kernel, num_heads=num_heads,
                          head_dim=head_dim, precise=precise),
        out_shape=jax.ShapeDtypeStruct((B, Nq, HD), jnp.float32),
        grid=(B, pl.cdiv(Nq, tq)),
        in_specs=[pl.BlockSpec((1, tq, HD), lambda b, qi: (b, qi, 0)),
                  pl.BlockSpec((1, Nkv, 2 * HD), lambda b, qi: (b, 0, 0))],
        out_specs=pl.BlockSpec((1, tq, HD), lambda b, qi: (b, qi, 0)),
        compiler_params=pltpu.CompilerParams(
            dimension_semantics=("parallel", "parallel"),
            vmem_limit_bytes=VMEM_LIMIT_BYTES),
    )(qf, kvf)


def cross_attention_pallas(mv_kv, mv_q, s_kv, s_q, params, cfg, precise=False):
    H = cfg['num_heads']
    hm = cfg['hidden_mv_channels']
    hs = cfg['hidden_s_channels']
    D = 16 * hm + hs
    B, Nq = mv_q.shape[:2]
    Nkv = mv_kv.shape[1]
    c_out = cfg['out_mv_channels']
    s_out = cfg['out_s_channels']

    # q / kv projections: the [mv | scalars] concat is fused into the kernel
    # as two MXU dots accumulating into one output tile.
    yq = fused_linear2(mv_q.reshape(B * Nq, -1), s_q.reshape(B * Nq, -1),
                       params['q_w_mv'], params['q_w_s'], params['q_b'],
                       precise=precise)                       # (B*Nq, H*D)
    ykv = fused_linear2(mv_kv.reshape(B * Nkv, -1), s_kv.reshape(B * Nkv, -1),
                        params['kv_w_mv'], params['kv_w_s'], params['kv_b'],
                        precise=precise)                      # (B*Nkv, 2*H*D)

    # Head-major projection columns mean the attention kernel can consume and
    # produce lane-dense (items, H*D) slabs directly: free reshapes, no XLA
    # transposes anywhere in the wrapper.
    qf = yq.reshape(B, Nq, H * D)
    kvf = ykv.reshape(B, Nkv, 2 * H * D)
    out = geometric_attention(qf, kvf, num_heads=H, head_dim=D, precise=precise)

    # Fused output projection (its input rows were permuted at prep time to
    # accept exactly this head-major layout).
    y = fused_linear1(out.reshape(B * Nq, H * D), params['out_w'],
                      params['out_b'], precise=precise)       # (B*Nq, c_out*16 + s_out)
    out_mv = y[:, :c_out * 16].reshape(B, Nq, c_out, 16)
    out_s = y[:, c_out * 16:].reshape(B, Nq, s_out)
    # TODO(synk): GradeDropout is a no-op here (config.dropout_prob=None / eval mode).
    # TODO(synk): multi_query=True (shared K/V head) path not implemented; config uses False.
    return out_mv, out_s


# -----------------------------------------------------------------------------
# Parameters (deterministic, synthetic) and their fused / folded matmul form
# -----------------------------------------------------------------------------
def init_equi_params(key, c_in_mv, s_in, c_out_mv, s_out, scale=0.3):
    ks = jax.random.split(key, 6)
    r = lambda k, shp: scale * jax.random.normal(k, shp, jnp.float32)
    return dict(w_mv=r(ks[0], (c_out_mv, c_in_mv, NUM_GRADES)),   # grade basis
                b_mv=r(ks[1], (c_out_mv,)),                       # -> grade-0
                w_s2mv=r(ks[2], (s_in, c_out_mv)),                # scalars -> grade-0
                w_mv2s=r(ks[3], (c_in_mv, s_out)),                # grade-0 -> scalars
                w_s2s=r(ks[4], (s_in, s_out)),
                b_s=r(ks[5], (s_out,)))


def build_fused_weight(p):
    """EquiLinear as one dense [[A, C], [B, D]] matrix on (C*16 | S) features."""
    gmask = grade_mask()
    eye16 = jnp.eye(16, dtype=jnp.float32)
    e0 = eye16[0]
    c_out, c_in, _ = p['w_mv'].shape
    s_in, s_out = p['w_s2s'].shape
    # effective per-blade weight W_eff[i, o, x] = sum_g w[o,i,g] * gmask[g,x]
    w_eff = jnp.einsum('oig,gx->iox', p['w_mv'], gmask,
                       precision=jax.lax.Precision.HIGHEST)
    A = (w_eff[:, None, :, :] * eye16[None, :, None, :]).reshape(c_in * 16, c_out * 16)
    Bm = (p['w_s2mv'][:, :, None] * e0).reshape(s_in, c_out * 16)
    C = (p['w_mv2s'][:, None, :] * e0[None, :, None]).reshape(c_in * 16, s_out)
    W = jnp.concatenate([jnp.concatenate([A, C], axis=1),
                         jnp.concatenate([Bm, p['w_s2s']], axis=1)], axis=0)
    bias = jnp.concatenate([(p['b_mv'][:, None] * e0).reshape(c_out * 16), p['b_s']])
    return W, bias.reshape(1, c_out * 16 + s_out)


def projection_head_perm(num_heads, hm, hs, n_splits):
    """new column -> old column for a q/kv projection.

    Old layout: [mv (channel = hidden*H + head, blade) | scalars (hidden*H + head)].
    New layout: [split][head][mv hidden, blade | scalar hidden]  (head-major).
    """
    D = 16 * hm + hs
    c_mv_total = n_splits * num_heads * hm
    perm = np.empty(n_splits * num_heads * D, dtype=np.int32)
    for t in range(n_splits):
        for h in range(num_heads):
            base = (t * num_heads + h) * D
            for m in range(hm):
                c = t * num_heads * hm + m * num_heads + h
                perm[base + m * 16: base + (m + 1) * 16] = np.arange(c * 16, (c + 1) * 16)
            for s in range(hs):
                sc = t * num_heads * hs + s * num_heads + h
                perm[base + 16 * hm + s] = c_mv_total * 16 + sc
    return perm


def merged_head_perm(num_heads, hm, hs):
    """new row -> old row for the out-projection input.

    Old layout: [mv (channel = head*hm + hidden, blade) | scalars (head*hs + hidden)].
    New layout: [head][mv hidden, blade | scalar hidden]  (head-major attention output).
    """
    D = 16 * hm + hs
    perm = np.empty(num_heads * D, dtype=np.int32)
    for h in range(num_heads):
        base = h * D
        for m in range(hm):
            c = h * hm + m
            perm[base + m * 16: base + (m + 1) * 16] = np.arange(c * 16, (c + 1) * 16)
        for s in range(hs):
            perm[base + 16 * hm + s] = num_heads * hm * 16 + h * hs + s
    return perm


def prepare_params(raw, cfg):
    """Fuse, permute head-major, split [mv|scalar] rows, fold signs / scales."""
    H = cfg['num_heads']
    hm = cfg['hidden_mv_channels']
    hs = cfg['hidden_s_channels']
    D = 16 * hm + hs
    scale = 1.0 / math.sqrt(D)

    w_q, b_q = build_fused_weight(raw['q'])
    w_kv, b_kv = build_fused_weight(raw['kv'])
    w_out, b_out = build_fused_weight(raw['out'])

    perm_q = projection_head_perm(H, hm, hs, n_splits=1)
    perm_kv = projection_head_perm(H, hm, hs, n_splits=2)
    perm_out = merged_head_perm(H, hm, hs)

    # Minkowski signs + 1/sqrt(D) scale folded into the q projection columns.
    sign_scale = np.concatenate([np.tile(np.asarray(IP_SIGNS, np.float32), hm),
                                 np.ones(hs, np.float32)]) * scale
    q_col_scale = jnp.asarray(np.tile(sign_scale, H), jnp.float32)

    # head_scale folded into the V half of the kv projection columns.
    head_scale = np.asarray(raw['head_scale'], np.float32)
    kv_col_scale = jnp.asarray(
        np.concatenate([np.ones(H * D, np.float32), np.repeat(head_scale, D)]),
        jnp.float32)

    wq = w_q[:, perm_q] * q_col_scale[None, :]
    wkv = w_kv[:, perm_kv] * kv_col_scale[None, :]
    km_q = cfg['in_q_mv_channels'] * 16
    km_kv = cfg['in_kv_mv_channels'] * 16

    return dict(
        q_w_mv=wq[:km_q], q_w_s=wq[km_q:],
        q_b=b_q[:, perm_q] * q_col_scale[None, :],
        kv_w_mv=wkv[:km_kv], kv_w_s=wkv[km_kv:],
        kv_b=b_kv[:, perm_kv] * kv_col_scale[None, :],
        out_w=w_out[perm_out, :],
        out_b=b_out)


# -----------------------------------------------------------------------------
# Pure-JAX reference (same math, "natural" un-flattened formulation)
# -----------------------------------------------------------------------------
def reference_forward(mv_kv, mv_q, s_kv, s_q, raw, cfg):
    H = cfg['num_heads']
    hm = cfg['hidden_mv_channels']
    hs = cfg['hidden_s_channels']
    gmask = grade_mask()
    signs16 = jnp.asarray(IP_SIGNS, jnp.float32)
    HIGHEST = jax.lax.Precision.HIGHEST

    def equi(mv, s, p):
        out_mv = jnp.einsum('...ix,oig,gx->...ox', mv, p['w_mv'], gmask,
                            precision=HIGHEST)
        g0 = jnp.einsum('...s,so->...o', s, p['w_s2mv'], precision=HIGHEST) + p['b_mv']
        out_mv = out_mv.at[..., 0].add(g0)
        out_s = (jnp.einsum('...i,io->...o', mv[..., 0], p['w_mv2s'], precision=HIGHEST)
                 + jnp.einsum('...s,so->...o', s, p['w_s2s'], precision=HIGHEST)
                 + p['b_s'])
        return out_mv, out_s

    q_mv, q_s = equi(mv_q, s_q, raw['q'])
    kv_mv, kv_s = equi(mv_kv, s_kv, raw['kv'])
    k_mv, v_mv = kv_mv[..., :H * hm, :], kv_mv[..., H * hm:, :]
    k_s, v_s = kv_s[..., :H * hs], kv_s[..., H * hs:]
    B, Nq = mv_q.shape[:2]

    def heads_mv(x):
        return jnp.transpose(x.reshape(B, x.shape[1], hm, H, 16), (0, 3, 1, 2, 4))

    def heads_s(x):
        return jnp.transpose(x.reshape(B, x.shape[1], hs, H), (0, 3, 1, 2))

    qmh, kmh, vmh = heads_mv(q_mv), heads_mv(k_mv), heads_mv(v_mv)
    qsh, ksh, vsh = heads_s(q_s), heads_s(k_s), heads_s(v_s)
    scale = 1.0 / math.sqrt(16 * hm + hs)
    logits = (jnp.einsum('bhqcx,x,bhkcx->bhqk', qmh, signs16, kmh, precision=HIGHEST)
              + jnp.einsum('bhqc,bhkc->bhqk', qsh, ksh, precision=HIGHEST)) * scale
    attn = jax.nn.softmax(logits, axis=-1)
    hmv = jnp.einsum('bhqk,bhkcx->bhqcx', attn, vmh, precision=HIGHEST)
    hsc = jnp.einsum('bhqk,bhkc->bhqc', attn, vsh, precision=HIGHEST)
    hscale = raw['head_scale']
    hmv = hmv * hscale[None, :, None, None, None]
    hsc = hsc * hscale[None, :, None, None]
    hmv = jnp.transpose(hmv, (0, 2, 1, 3, 4)).reshape(B, Nq, H * hm, 16)
    hsc = jnp.transpose(hsc, (0, 2, 1, 3)).reshape(B, Nq, H * hs)
    return equi(hmv, hsc, raw['out'])


# -----------------------------------------------------------------------------
if __name__ == "__main__":
    cfg = dict(in_q_mv_channels=3, in_q_s_channels=4,
               in_kv_mv_channels=5, in_kv_s_channels=6,
               hidden_mv_channels=2, hidden_s_channels=4,
               num_heads=2, out_mv_channels=3, out_s_channels=5,
               multi_query=False, head_scale=True, dropout_prob=None)
    B, Nq, Nkv = 2, 8, 16
    H, hm, hs = cfg['num_heads'], cfg['hidden_mv_channels'], cfg['hidden_s_channels']

    key = jax.random.PRNGKey(0)
    k_in, k_q, k_kv, k_out = jax.random.split(key, 4)
    raw = dict(
        q=init_equi_params(k_q, cfg['in_q_mv_channels'], cfg['in_q_s_channels'],
                           H * hm, H * hs),
        kv=init_equi_params(k_kv, cfg['in_kv_mv_channels'], cfg['in_kv_s_channels'],
                            2 * H * hm, 2 * H * hs),
        out=init_equi_params(k_out, H * hm, H * hs,
                             cfg['out_mv_channels'], cfg['out_s_channels']),
        # learnable per-head scale (module inits to ones; non-trivial values here
        # exercise the fold into the V projection columns)
        head_scale=1.0 + 0.25 * jnp.arange(H, dtype=jnp.float32),
    )
    params = prepare_params(raw, cfg)

    ki = jax.random.split(k_in, 4)
    mv_kv = jax.random.normal(ki[0], (B, Nkv, cfg['in_kv_mv_channels'], 16), jnp.float32)
    mv_q = jax.random.normal(ki[1], (B, Nq, cfg['in_q_mv_channels'], 16), jnp.float32)
    s_kv = jax.random.normal(ki[2], (B, Nkv, cfg['in_kv_s_channels']), jnp.float32)
    s_q = jax.random.normal(ki[3], (B, Nq, cfg['in_q_s_channels']), jnp.float32)

    # Fast (production) path: bf16 MXU matmuls with f32 accumulation.
    fwd_fast = jax.jit(functools.partial(cross_attention_pallas, cfg=cfg, precise=False))
    out_mv, out_s = fwd_fast(mv_kv, mv_q, s_kv, s_q, params)
    jax.block_until_ready((out_mv, out_s))
    assert out_mv.shape == (B, Nq, cfg['out_mv_channels'], 16)
    assert out_s.shape == (B, Nq, cfg['out_s_channels'])

    ref_mv, ref_s = reference_forward(mv_kv, mv_q, s_kv, s_q, raw, cfg)

    # bf16 path: loose sanity gate (structure/layout bugs would be O(1) errors).
    np.testing.assert_allclose(np.asarray(out_mv), np.asarray(ref_mv),
                               atol=1e-1, rtol=1e-1)
    np.testing.assert_allclose(np.asarray(out_s), np.asarray(ref_s),
                               atol=1e-1, rtol=1e-1)

    # Precise debug path: tight 1e-3 correctness gate against the f32 reference.
    fwd_precise = jax.jit(functools.partial(cross_attention_pallas, cfg=cfg, precise=True))
    pm, ps = fwd_precise(mv_kv, mv_q, s_kv, s_q, params)
    jax.block_until_ready((pm, ps))
    np.testing.assert_allclose(np.asarray(pm), np.asarray(ref_mv),
                               atol=1e-3, rtol=1e-3)
    np.testing.assert_allclose(np.asarray(ps), np.asarray(ref_s),
                               atol=1e-3, rtol=1e-3)
    print("KERNEL_OK")
</pallas_src>

<mosaic_0001>
module attributes {stable_mosaic.version = 11 : i64} {
  func.func @fused_linear2_kernel(%arg0: i32, %arg1: memref<32x80xf32, #tpu.memory_space<vmem>>, %arg2: memref<32x6xf32, #tpu.memory_space<vmem>>, %arg3: memref<80x144xf32, #tpu.memory_space<vmem>>, %arg4: memref<6x144xf32, #tpu.memory_space<vmem>>, %arg5: memref<1x144xf32, #tpu.memory_space<vmem>>, %arg6: memref<32x144xf32, #tpu.memory_space<vmem>>) attributes {dimension_semantics = [#tpu.dimension_semantics<parallel>], iteration_bounds = array<i64: 1>, scalar_prefetch = 0 : i64, scratch_operands = 0 : i64, tpu.core_type = #tpu.core_type<tc>, window_params = [{transform_indices = @transform_0, window_bounds = array<i64: 32, 80>}, {transform_indices = @transform_1, window_bounds = array<i64: 32, 6>}, {pipeline_mode = #tpu.pipeline_mode<synchronous>, transform_indices = @transform_2, window_bounds = array<i64: 80, 144>}, {pipeline_mode = #tpu.pipeline_mode<synchronous>, transform_indices = @transform_3, window_bounds = array<i64: 6, 144>}, {pipeline_mode = #tpu.pipeline_mode<synchronous>, transform_indices = @transform_4, window_bounds = array<i64: 1, 144>}, {transform_indices = @transform_5, window_bounds = array<i64: 32, 144>}]} {
    %c0 = arith.constant 0 : index
    %c0_0 = arith.constant 0 : index
    %0 = vector.load %arg1[%c0, %c0_0] : memref<32x80xf32, #tpu.memory_space<vmem>>, vector<32x80xf32>
    %c0_1 = arith.constant 0 : index
    %c0_2 = arith.constant 0 : index
    %1 = vector.load %arg3[%c0_1, %c0_2] : memref<80x144xf32, #tpu.memory_space<vmem>>, vector<80x144xf32>
    %2 = arith.truncf %0 : vector<32x80xf32> to vector<32x80xbf16>
    %3 = arith.truncf %1 : vector<80x144xf32> to vector<80x144xbf16>
    %cst = arith.constant dense<0.000000e+00> : vector<32x144xf32>
    %4 = tpu.matmul %2, %3, %cst {dimension_numbers = #tpu.dot_dimension_numbers<[1], [0], [0], [1], [0, 0, 1, 1], [], []>} : vector<32x80xbf16>, vector<80x144xbf16>, vector<32x144xf32> -> vector<32x144xf32>
    %c0_3 = arith.constant 0 : index
    %c0_4 = arith.constant 0 : index
    %5 = vector.load %arg2[%c0_3, %c0_4] : memref<32x6xf32, #tpu.memory_space<vmem>>, vector<32x6xf32>
    %c0_5 = arith.constant 0 : index
    %c0_6 = arith.constant 0 : index
    %6 = vector.load %arg4[%c0_5, %c0_6] : memref<6x144xf32, #tpu.memory_space<vmem>>, vector<6x144xf32>
    %7 = arith.truncf %5 : vector<32x6xf32> to vector<32x6xbf16>
    %8 = arith.truncf %6 : vector<6x144xf32> to vector<6x144xbf16>
    %cst_7 = arith.constant dense<0.000000e+00> : vector<32x144xf32>
    %9 = tpu.matmul %7, %8, %cst_7 {dimension_numbers = #tpu.dot_dimension_numbers<[1], [0], [0], [1], [0, 0, 1, 1], [], []>} : vector<32x6xbf16>, vector<6x144xbf16>, vector<32x144xf32> -> vector<32x144xf32>
    %10 = arith.addf %4, %9 : vector<32x144xf32>
    %c0_8 = arith.constant 0 : index
    %c0_9 = arith.constant 0 : index
    %11 = vector.load %arg5[%c0_8, %c0_9] : memref<1x144xf32, #tpu.memory_space<vmem>>, vector<1x144xf32>
    %12 = vector.broadcast %11 : vector<1x144xf32> to vector<32x144xf32>
    %13 = arith.addf %10, %12 : vector<32x144xf32>
    %c0_10 = arith.constant 0 : index
    %c0_11 = arith.constant 0 : index
    %14 = vector.load %arg6[%c0_10, %c0_11] : memref<32x144xf32, #tpu.memory_space<vmem>>, vector<32x144xf32>
    tpu.vector_store %arg6[%c0_10, %c0_11], %13 {strides = array<i32>} : memref<32x144xf32, #tpu.memory_space<vmem>>, vector<32x144xf32>,
    return
  }
  func.func @transform_0(%arg0: i32) -> (i32, i32) {
    %c0_i32 = arith.constant 0 : i32
    %c0_i32_0 = arith.constant 0 : i32
    return %arg0, %c0_i32 : i32, i32
  }
  func.func @transform_1(%arg0: i32) -> (i32, i32) {
    %c0_i32 = arith.constant 0 : i32
    %c0_i32_0 = arith.constant 0 : i32
    return %arg0, %c0_i32 : i32, i32
  }
  func.func @transform_2(%arg0: i32) -> (i32, i32) {
    %c0_i32 = arith.constant 0 : i32
    %c0_i32_0 = arith.constant 0 : i32
    %c0_i32_1 = arith.constant 0 : i32
    return %c0_i32, %c0_i32_0 : i32, i32
  }
  func.func @transform_3(%arg0: i32) -> (i32, i32) {
    %c0_i32 = arith.constant 0 : i32
    %c0_i32_0 = arith.constant 0 : i32
    %c0_i32_1 = arith.constant 0 : i32
    return %c0_i32, %c0_i32_0 : i32, i32
  }
  func.func @transform_4(%arg0: i32) -> (i32, i32) {
    %c0_i32 = arith.constant 0 : i32
    %c0_i32_0 = arith.constant 0 : i32
    %c0_i32_1 = arith.constant 0 : i32
    return %c0_i32, %c0_i32_0 : i32, i32
  }
  func.func @transform_5(%arg0: i32) -> (i32, i32) {
    %c0_i32 = arith.constant 0 : i32
    %c0_i32_0 = arith.constant 0 : i32
    return %arg0, %c0_i32 : i32, i32
  }
}

module attributes {stable_mosaic.version = 11 : i64} {
  func.func @fused_linear2_kernel(%arg0: i32, %arg1: memref<16x48xf32, #tpu.memory_space<vmem>>, %arg2: memref<16x4xf32, #tpu.memory_space<vmem>>, %arg3: memref<48x72xf32, #tpu.memory_space<vmem>>, %arg4: memref<4x72xf32, #tpu.memory_space<vmem>>, %arg5: memref<1x72xf32, #tpu.memory_space<vmem>>, %arg6: memref<16x72xf32, #tpu.memory_space<vmem>>) attributes {dimension_semantics = [#tpu.dimension_semantics<parallel>], iteration_bounds = array<i64: 1>, scalar_prefetch = 0 : i64, scratch_operands = 0 : i64, tpu.core_type = #tpu.core_type<tc>, window_params = [{transform_indices = @transform_0, window_bounds = array<i64: 16, 48>}, {transform_indices = @transform_1, window_bounds = array<i64: 16, 4>}, {pipeline_mode = #tpu.pipeline_mode<synchronous>, transform_indices = @transform_2, window_bounds = array<i64: 48, 72>}, {pipeline_mode = #tpu.pipeline_mode<synchronous>, transform_indices = @transform_3, window_bounds = array<i64: 4, 72>}, {pipeline_mode = #tpu.pipeline_mode<synchronous>, transform_indices = @transform_4, window_bounds = array<i64: 1, 72>}, {transform_indices = @transform_5, window_bounds = array<i64: 16, 72>}]} {
    %c0 = arith.constant 0 : index
    %c0_0 = arith.constant 0 : index
    %0 = vector.load %arg1[%c0, %c0_0] : memref<16x48xf32, #tpu.memory_space<vmem>>, vector<16x48xf32>
    %c0_1 = arith.constant 0 : index
    %c0_2 = arith.constant 0 : index
    %1 = vector.load %arg3[%c0_1, %c0_2] : memref<48x72xf32, #tpu.memory_space<vmem>>, vector<48x72xf32>
    %2 = arith.truncf %0 : vector<16x48xf32> to vector<16x48xbf16>
    %3 = arith.truncf %1 : vector<48x72xf32> to vector<48x72xbf16>
    %cst = arith.constant dense<0.000000e+00> : vector<16x72xf32>
    %4 = tpu.matmul %2, %3, %cst {dimension_numbers = #tpu.dot_dimension_numbers<[1], [0], [0], [1], [0, 0, 1, 1], [], []>} : vector<16x48xbf16>, vector<48x72xbf16>, vector<16x72xf32> -> vector<16x72xf32>
    %c0_3 = arith.constant 0 : index
    %c0_4 = arith.constant 0 : index
    %5 = vector.load %arg2[%c0_3, %c0_4] : memref<16x4xf32, #tpu.memory_space<vmem>>, vector<16x4xf32>
    %c0_5 = arith.constant 0 : index
    %c0_6 = arith.constant 0 : index
    %6 = vector.load %arg4[%c0_5, %c0_6] : memref<4x72xf32, #tpu.memory_space<vmem>>, vector<4x72xf32>
    %7 = arith.truncf %5 : vector<16x4xf32> to vector<16x4xbf16>
    %8 = arith.truncf %6 : vector<4x72xf32> to vector<4x72xbf16>
    %cst_7 = arith.constant dense<0.000000e+00> : vector<16x72xf32>
    %9 = tpu.matmul %7, %8, %cst_7 {dimension_numbers = #tpu.dot_dimension_numbers<[1], [0], [0], [1], [0, 0, 1, 1], [], []>} : vector<16x4xbf16>, vector<4x72xbf16>, vector<16x72xf32> -> vector<16x72xf32>
    %10 = arith.addf %4, %9 : vector<16x72xf32>
    %c0_8 = arith.constant 0 : index
    %c0_9 = arith.constant 0 : index
    %11 = vector.load %arg5[%c0_8, %c0_9] : memref<1x72xf32, #tpu.memory_space<vmem>>, vector<1x72xf32>
    %12 = vector.broadcast %11 : vector<1x72xf32> to vector<16x72xf32>
    %13 = arith.addf %10, %12 : vector<16x72xf32>
    %c0_10 = arith.constant 0 : index
    %c0_11 = arith.constant 0 : index
    %14 = vector.load %arg6[%c0_10, %c0_11] : memref<16x72xf32, #tpu.memory_space<vmem>>, vector<16x72xf32>
    tpu.vector_store %arg6[%c0_10, %c0_11], %13 {strides = array<i32>} : memref<16x72xf32, #tpu.memory_space<vmem>>, vector<16x72xf32>,
    return
  }
  func.func @transform_0(%arg0: i32) -> (i32, i32) {
    %c0_i32 = arith.constant 0 : i32
    %c0_i32_0 = arith.constant 0 : i32
    return %arg0, %c0_i32 : i32, i32
  }
  func.func @transform_1(%arg0: i32) -> (i32, i32) {
    %c0_i32 = arith.constant 0 : i32
    %c0_i32_0 = arith.constant 0 : i32
    return %arg0, %c0_i32 : i32, i32
  }
  func.func @transform_2(%arg0: i32) -> (i32, i32) {
    %c0_i32 = arith.constant 0 : i32
    %c0_i32_0 = arith.constant 0 : i32
    %c0_i32_1 = arith.constant 0 : i32
    return %c0_i32, %c0_i32_0 : i32, i32
  }
  func.func @transform_3(%arg0: i32) -> (i32, i32) {
    %c0_i32 = arith.constant 0 : i32
    %c0_i32_0 = arith.constant 0 : i32
    %c0_i32_1 = arith.constant 0 : i32
    return %c0_i32, %c0_i32_0 : i32, i32
  }
  func.func @transform_4(%arg0: i32) -> (i32, i32) {
    %c0_i32 = arith.constant 0 : i32
    %c0_i32_0 = arith.constant 0 : i32
    %c0_i32_1 = arith.constant 0 : i32
    return %c0_i32, %c0_i32_0 : i32, i32
  }
  func.func @transform_5(%arg0: i32) -> (i32, i32) {
    %c0_i32 = arith.constant 0 : i32
    %c0_i32_0 = arith.constant 0 : i32
    return %arg0, %c0_i32 : i32, i32
  }
}

module attributes {stable_mosaic.version = 11 : i64} {
  func.func @geometric_attention_kernel(%arg0: i32, %arg1: i32, %arg2: memref<1x8x72xf32, #tpu.memory_space<vmem>>, %arg3: memref<1x16x144xf32, #tpu.memory_space<vmem>>, %arg4: memref<1x8x72xf32, #tpu.memory_space<vmem>>) attributes {dimension_semantics = [#tpu.dimension_semantics<parallel>, #tpu.dimension_semantics<parallel>], iteration_bounds = array<i64: 2, 1>, scalar_prefetch = 0 : i64, scratch_operands = 0 : i64, tpu.core_type = #tpu.core_type<tc>, window_params = [{transform_indices = @transform_0, window_bounds = array<i64: 1, 8, 72>}, {transform_indices = @transform_1, window_bounds = array<i64: 1, 16, 144>}, {transform_indices = @transform_2, window_bounds = array<i64: 1, 8, 72>}]} {
    %c0 = arith.constant 0 : index
    %c0_0 = arith.constant 0 : index
    %c0_1 = arith.constant 0 : index
    %0 = vector.load %arg2[%c0, %c0_0, %c0_1] : memref<1x8x72xf32, #tpu.memory_space<vmem>>, vector<1x8x36xf32>
    %1 = vector.shape_cast %0 : vector<1x8x36xf32> to vector<8x36xf32>
    %c0_2 = arith.constant 0 : index
    %c0_3 = arith.constant 0 : index
    %c0_4 = arith.constant 0 : index
    %2 = vector.load %arg3[%c0_2, %c0_3, %c0_4] : memref<1x16x144xf32, #tpu.memory_space<vmem>>, vector<1x16x36xf32>
    %3 = vector.shape_cast %2 : vector<1x16x36xf32> to vector<16x36xf32>
    %c0_5 = arith.constant 0 : index
    %c0_6 = arith.constant 0 : index
    %c72 = arith.constant 72 : index
    %4 = vector.load %arg3[%c0_5, %c0_6, %c72] : memref<1x16x144xf32, #tpu.memory_space<vmem>>, vector<1x16x36xf32>
    %5 = vector.shape_cast %4 : vector<1x16x36xf32> to vector<16x36xf32>
    %6 = arith.truncf %1 : vector<8x36xf32> to vector<8x36xbf16>
    %7 = arith.truncf %3 : vector<16x36xf32> to vector<16x36xbf16>
    %cst = arith.constant dense<0.000000e+00> : vector<8x16xf32>
    %8 = tpu.matmul %6, %7, %cst {dimension_numbers = #tpu.dot_dimension_numbers<[1], [1], [0], [0], [0, 0, 1, 0], [], []>} : vector<8x36xbf16>, vector<16x36xbf16>, vector<8x16xf32> -> vector<8x16xf32>
    %cst_7 = arith.constant dense<0xFF800000> : vector<8xf32>
    %9 = vector.multi_reduction <maximumf>, %8, %cst_7 [1] : vector<8x16xf32> to vector<8xf32>
    %10 = vector.shape_cast %9 : vector<8xf32> to vector<8x1xf32>
    %11 = vector.broadcast %10 : vector<8x1xf32> to vector<8x16xf32>
    %12 = arith.subf %8, %11 : vector<8x16xf32>
    %13 = math.exp %12 : vector<8x16xf32>
    %cst_8 = arith.constant dense<0.000000e+00> : vector<8xf32>
    %14 = vector.multi_reduction <add>, %13, %cst_8 [1] : vector<8x16xf32> to vector<8xf32>
    %15 = vector.shape_cast %14 : vector<8xf32> to vector<8x1xf32>
    %16 = arith.truncf %13 : vector<8x16xf32> to vector<8x16xbf16>
    %17 = arith.truncf %5 : vector<16x36xf32> to vector<16x36xbf16>
    %cst_9 = arith.constant dense<0.000000e+00> : vector<8x36xf32>
    %18 = tpu.matmul %16, %17, %cst_9 {dimension_numbers = #tpu.dot_dimension_numbers<[1], [0], [0], [1], [0, 0, 1, 1], [], []>} : vector<8x16xbf16>, vector<16x36xbf16>, vector<8x36xf32> -> vector<8x36xf32>
    %19 = tpu.reciprocal %15 {approx = true} : vector<8x1xf32> -> vector<8x1xf32>
    %20 = vector.broadcast %19 : vector<8x1xf32> to vector<8x36xf32>
    %21 = arith.mulf %18, %20 : vector<8x36xf32>
    %c0_10 = arith.constant 0 : index
    %c0_11 = arith.constant 0 : index
    %c36 = arith.constant 36 : index
    %22 = vector.load %arg2[%c0_10, %c0_11, %c36] : memref<1x8x72xf32, #tpu.memory_space<vmem>>, vector<1x8x36xf32>
    %23 = vector.shape_cast %22 : vector<1x8x36xf32> to vector<8x36xf32>
    %c0_12 = arith.constant 0 : index
    %c0_13 = arith.constant 0 : index
    %c36_14 = arith.constant 36 : index
    %24 = vector.load %arg3[%c0_12, %c0_13, %c36_14] : memref<1x16x144xf32, #tpu.memory_space<vmem>>, vector<1x16x36xf32>
    %25 = vector.shape_cast %24 : vector<1x16x36xf32> to vector<16x36xf32>
    %c0_15 = arith.constant 0 : index
    %c0_16 = arith.constant 0 : index
    %c108 = arith.constant 108 : index
    %26 = vector.load %arg3[%c0_15, %c0_16, %c108] : memref<1x16x144xf32, #tpu.memory_space<vmem>>, vector<1x16x36xf32>
    %27 = vector.shape_cast %26 : vector<1x16x36xf32> to vector<16x36xf32>
    %28 = arith.truncf %23 : vector<8x36xf32> to vector<8x36xbf16>
    %29 = arith.truncf %25 : vector<16x36xf32> to vector<16x36xbf16>
    %cst_17 = arith.constant dense<0.000000e+00> : vector<8x16xf32>
    %30 = tpu.matmul %28, %29, %cst_17 {dimension_numbers = #tpu.dot_dimension_numbers<[1], [1], [0], [0], [0, 0, 1, 0], [], []>} : vector<8x36xbf16>, vector<16x36xbf16>, vector<8x16xf32> -> vector<8x16xf32>
    %cst_18 = arith.constant dense<0xFF800000> : vector<8xf32>
    %31 = vector.multi_reduction <maximumf>, %30, %cst_18 [1] : vector<8x16xf32> to vector<8xf32>
    %32 = vector.shape_cast %31 : vector<8xf32> to vector<8x1xf32>
    %33 = vector.broadcast %32 : vector<8x1xf32> to vector<8x16xf32>
    %34 = arith.subf %30, %33 : vector<8x16xf32>
    %35 = math.exp %34 : vector<8x16xf32>
    %cst_19 = arith.constant dense<0.000000e+00> : vector<8xf32>
    %36 = vector.multi_reduction <add>, %35, %cst_19 [1] : vector<8x16xf32> to vector<8xf32>
    %37 = vector.shape_cast %36 : vector<8xf32> to vector<8x1xf32>
    %38 = arith.truncf %35 : vector<8x16xf32> to vector<8x16xbf16>
    %39 = arith.truncf %27 : vector<16x36xf32> to vector<16x36xbf16>
    %cst_20 = arith.constant dense<0.000000e+00> : vector<8x36xf32>
    %40 = tpu.matmul %38, %39, %cst_20 {dimension_numbers = #tpu.dot_dimension_numbers<[1], [0], [0], [1], [0, 0, 1, 1], [], []>} : vector<8x16xbf16>, vector<16x36xbf16>, vector<8x36xf32> -> vector<8x36xf32>
    %41 = tpu.reciprocal %37 {approx = true} : vector<8x1xf32> -> vector<8x1xf32>
    %42 = vector.broadcast %41 : vector<8x1xf32> to vector<8x36xf32>
    %43 = arith.mulf %40, %42 : vector<8x36xf32>
    %44 = tpu.concatenate %21, %43 in 1 : vector<8x36xf32>, vector<8x36xf32> -> vector<8x72xf32>
    %c0_21 = arith.constant 0 : index
    %c0_22 = arith.constant 0 : index
    %c0_23 = arith.constant 0 : index
    %45 = vector.load %arg4[%c0_21, %c0_22, %c0_23] : memref<1x8x72xf32, #tpu.memory_space<vmem>>, vector<1x8x72xf32>
    %46 = vector.shape_cast %45 : vector<1x8x72xf32> to vector<8x72xf32>
    %47 = vector.shape_cast %44 : vector<8x72xf32> to vector<1x8x72xf32>
    tpu.vector_store %arg4[%c0_21, %c0_22, %c0_23], %47 {strides = array<i32>} : memref<1x8x72xf32, #tpu.memory_space<vmem>>, vector<1x8x72xf32>,
    return
  }
  func.func @transform_0(%arg0: i32, %arg1: i32) -> (i32, i32, i32) {
    %c0_i32 = arith.constant 0 : i32
    %c0_i32_0 = arith.constant 0 : i32
    return %arg0, %arg1, %c0_i32 : i32, i32, i32
  }
  func.func @transform_1(%arg0: i32, %arg1: i32) -> (i32, i32, i32) {
    %c0_i32 = arith.constant 0 : i32
    %c0_i32_0 = arith.constant 0 : i32
    %c0_i32_1 = arith.constant 0 : i32
    return %arg0, %c0_i32, %c0_i32_0 : i32, i32, i32
  }
  func.func @transform_2(%arg0: i32, %arg1: i32) -> (i32, i32, i32) {
    %c0_i32 = arith.constant 0 : i32
    %c0_i32_0 = arith.constant 0 : i32
    return %arg0, %arg1, %c0_i32 : i32, i32, i32
  }
}

module attributes {stable_mosaic.version = 11 : i64} {
  func.func @fused_linear1_kernel(%arg0: i32, %arg1: memref<16x72xf32, #tpu.memory_space<vmem>>, %arg2: memref<72x53xf32, #tpu.memory_space<vmem>>, %arg3: memref<1x53xf32, #tpu.memory_space<vmem>>, %arg4: memref<16x53xf32, #tpu.memory_space<vmem>>) attributes {dimension_semantics = [#tpu.dimension_semantics<parallel>], iteration_bounds = array<i64: 1>, scalar_prefetch = 0 : i64, scratch_operands = 0 : i64, tpu.core_type = #tpu.core_type<tc>, window_params = [{transform_indices = @transform_0, window_bounds = array<i64: 16, 72>}, {pipeline_mode = #tpu.pipeline_mode<synchronous>, transform_indices = @transform_1, window_bounds = array<i64: 72, 53>}, {pipeline_mode = #tpu.pipeline_mode<synchronous>, transform_indices = @transform_2, window_bounds = array<i64: 1, 53>}, {transform_indices = @transform_3, window_bounds = array<i64: 16, 53>}]} {
    %c0 = arith.constant 0 : index
    %c0_0 = arith.constant 0 : index
    %0 = vector.load %arg1[%c0, %c0_0] : memref<16x72xf32, #tpu.memory_space<vmem>>, vector<16x72xf32>
    %c0_1 = arith.constant 0 : index
    %c0_2 = arith.constant 0 : index
    %1 = vector.load %arg2[%c0_1, %c0_2] : memref<72x53xf32, #tpu.memory_space<vmem>>, vector<72x53xf32>
    %2 = arith.truncf %0 : vector<16x72xf32> to vector<16x72xbf16>
    %3 = arith.truncf %1 : vector<72x53xf32> to vector<72x53xbf16>
    %cst = arith.constant dense<0.000000e+00> : vector<16x53xf32>
    %4 = tpu.matmul %2, %3, %cst {dimension_numbers = #tpu.dot_dimension_numbers<[1], [0], [0], [1], [0, 0, 1, 1], [], []>} : vector<16x72xbf16>, vector<72x53xbf16>, vector<16x53xf32> -> vector<16x53xf32>
    %c0_3 = arith.constant 0 : index
    %c0_4 = arith.constant 0 : index
    %5 = vector.load %arg3[%c0_3, %c0_4] : memref<1x53xf32, #tpu.memory_space<vmem>>, vector<1x53xf32>
    %6 = vector.broadcast %5 : vector<1x53xf32> to vector<16x53xf32>
    %7 = arith.addf %4, %6 : vector<16x53xf32>
    %c0_5 = arith.constant 0 : index
    %c0_6 = arith.constant 0 : index
    %8 = vector.load %arg4[%c0_5, %c0_6] : memref<16x53xf32, #tpu.memory_space<vmem>>, vector<16x53xf32>
    tpu.vector_store %arg4[%c0_5, %c0_6], %7 {strides = array<i32>} : memref<16x53xf32, #tpu.memory_space<vmem>>, vector<16x53xf32>,
    return
  }
  func.func @transform_0(%arg0: i32) -> (i32, i32) {
    %c0_i32 = arith.constant 0 : i32
    %c0_i32_0 = arith.constant 0 : i32
    return %arg0, %c0_i32 : i32, i32
  }
  func.func @transform_1(%arg0: i32) -> (i32, i32) {
    %c0_i32 = arith.constant 0 : i32
    %c0_i32_0 = arith.constant 0 : i32
    %c0_i32_1 = arith.constant 0 : i32
    return %c0_i32, %c0_i32_0 : i32, i32
  }
  func.func @transform_2(%arg0: i32) -> (i32, i32) {
    %c0_i32 = arith.constant 0 : i32
    %c0_i32_0 = arith.constant 0 : i32
    %c0_i32_1 = arith.constant 0 : i32
    return %c0_i32, %c0_i32_0 : i32, i32
  }
  func.func @transform_3(%arg0: i32) -> (i32, i32) {
    %c0_i32 = arith.constant 0 : i32
    %c0_i32_0 = arith.constant 0 : i32
    return %arg0, %c0_i32 : i32, i32
  }
}

</mosaic_0001>

<llo_original>
// kernel: cross_attention_pallas.7
$region0: #{cross_attention_pallas.7}
  #allocation0 [shape = 'u32[]', space=smem, size = 0x4, offset = 0x4, fixed_abs, tag = 'smem constant byte address 0x4 - core index']
  #allocation1 [shape = 'u32[144,128]{1,0:T(1,128)}', space=vmem, size = 0x12000, scoped, tag = 'internal scratch']
  %s0 = inlined_call_operand.vmem [shape: f32[16,72], index: 0, kind: input, shape index: {}]
  %s1 = inlined_call_operand.vmem [shape: f32[72,53], index: 1, kind: input, shape index: {}]
  %s2 = inlined_call_operand.vmem [shape: f32[1,53], index: 2, kind: input, shape index: {}]
  %s3 = inlined_call_operand.vmem [shape: f32[16,53], index: 3, kind: output, shape index: {}]
  %s4 = sld [smem:[#allocation0]]
  $region22: #{cross_attention_pallas.7} parent=0
    _
  %s6 = ssub.s32 1, %s4
  %s7 = scalar_select 0, %s6, %s4
  // Predicated region
  $region2: #{cross_attention_pallas.7} parent=0 // pred_check
    _
  $region3: #{cross_attention_pallas.7} parent=0 // pred_check_branch
    %9 = sbr.rel (0) target = $region5
  $region4: #{cross_attention_pallas.7} parent=0 // pred_region
    _
  $region5: #{cross_attention_pallas.7} parent=0 // pred_fallthru
    _
  // Predicated region
  $region6: #{cross_attention_pallas.7} parent=0 // pred_check
    _
  $region7: #{cross_attention_pallas.7} parent=0 // pred_check_branch
    %11 = sbr.rel (0) target = $region9
  $region8: #{cross_attention_pallas.7} parent=0 // pred_region
    _
  $region9: #{cross_attention_pallas.7} parent=0 // pred_fallthru
    _
  // Predicated region
  $region10: #{cross_attention_pallas.7} parent=0 // pred_check
    _
  $region11: #{cross_attention_pallas.7} parent=0 // pred_check_branch
    %13 = sbr.rel (0) target = $region13
  $region12: #{cross_attention_pallas.7} parent=0 // pred_region
    _
  $region13: #{cross_attention_pallas.7} parent=0 // pred_fallthru
    _
  %v15 = vld [vmem:[%s0] sm:$0xff]
  %v16 = vld [vmem:[%s0 + $0x8] sm:$0xff]
  %v17 = vld [vmem:[%s1] sm:$0xff]
  %v18 = vld [vmem:[%s1 + $0x8] sm:$0xff]
  %v19 = vld [vmem:[%s1 + $0x10] sm:$0xff]
  %v20 = vld [vmem:[%s1 + $0x18] sm:$0xff]
  %v21 = vld [vmem:[%s1 + $0x20] sm:$0xff]
  %v22 = vld [vmem:[%s1 + $0x28] sm:$0xff]
  %v23 = vld [vmem:[%s1 + $0x30] sm:$0xff]
  %v24 = vld [vmem:[%s1 + $0x38] sm:$0xff]
  %v25 = vld [vmem:[%s1 + $0x40] sm:$0xff]
  %v26 = vpack.c.bf16 %v16, %v15
  %v27 = vpack.c.bf16 %v18, %v17
  %v28 = vpack.c.bf16 %v20, %v19
  %v29 = vpack.c.bf16 %v22, %v21
  %v30 = vpack.c.bf16 %v24, %v23
  %v31 = vpack.c.bf16 %v25, %v25
  %v32 = vld [vmem:[%s2] sm:$0x1]
  %v34 = vlaneseq
  %v35 = vshrl.u32 %v34, 7
  %v36 = vsub.s32 0, %v35
  %v37 = vrot.slane %v32, %v36
  %vm39 = vcmask 588800
  %v41 = vsel %vm39, %v26, 0
  %vm43 = vcmask 1043456
  %v45 = vsel %vm43, %v31, 0
  %47 = vmatprep.subr.bf16.mxu0 0
  %48 = vmatpush1.bf16.msra.mxu0 %v27
  %49 = vmatprep.subr.bf16.mxu0 0
  %50 = vmatpush1.bf16.msra.mxu0 %v28
  %51 = vmatprep.subr.bf16.mxu0 0
  %52 = vmatpush1.bf16.msra.mxu0 %v29
  %53 = vmatprep.subr.bf16.mxu0 0
  %54 = vmatpush1.bf16.msra.mxu0 %v30
  %55 = vmatprep.subr.bf16.mxu0 0
  %56 = vmatpush1.bf16.msra.mxu0 %v45
  %57 = vmatprep.subr.bf16.mxu0 0
  %58 = vmatpush1.bf16.msra.mxu0 0
  %59 = vmatprep.subr.bf16.mxu0 0
  %60 = vmatpush1.bf16.msra.mxu0 0
  %61 = vmatprep.subr.bf16.mxu0 0
  %62 = vmatpush1.bf16.msra.mxu0 0
  %63 = vmatprep.subr.bf16.mxu0 0
  %64 = vmatpush1.bf16.msra.mxu0 0
  %65 = vmatprep.subr.bf16.mxu0 0
  %66 = vmatpush1.bf16.msra.mxu0 0
  %67 = vmatprep.subr.bf16.mxu0 0
  %68 = vmatpush1.bf16.msra.mxu0 0
  %69 = vmatprep.subr.bf16.mxu0 0
  %70 = vmatpush1.bf16.msra.mxu0 0
  %71 = vmatprep.subr.bf16.mxu0 0
  %72 = vmatpush1.bf16.msra.mxu0 0
  %73 = vmatprep.subr.bf16.mxu0 0
  %74 = vmatpush1.bf16.msra.mxu0 0
  %75 = vmatprep.subr.bf16.mxu0 0
  %76 = vmatpush1.bf16.msra.mxu0 0
  %77 = vmatprep.subr.bf16.mxu0 0
  %78 = vmatpush1.bf16.msra.mxu0 0
  %79 = vmatprep.mubr.bf16.mxu0 0
  %80 = vmatmul.mubr.bf16.gmra.mrb[0].mxu0 %v41
  %v81 = vpop.f32.mrb[0].mxu0
  %v82 = vadd.f32 %v37, %v81
  %v83 = vpop.f32.mrb[0].mxu0
  %v84 = vpop.f32.mrb[0].mxu0
  %v85 = vadd.f32 %v37, %v84
  %v86 = vpop.f32.mrb[0].mxu0
  %87 = vdwg.mxu0
  %vm88 = vcmask 433152
  %89 = vst.msk [vmem:[%s3] sm:$0xff] %vm88, %v82
  %90 = vst.msk [vmem:[%s3 + $0x8] sm:$0xff] %vm88, %v85
  // Predicated region
  $region14: #{cross_attention_pallas.7} parent=0 // pred_check
    _
  $region15: #{cross_attention_pallas.7} parent=0 // pred_check_branch
    %92 = sbr.rel (0) target = $region17
  $region16: #{cross_attention_pallas.7} parent=0 // pred_region
    _
  $region17: #{cross_attention_pallas.7} parent=0 // pred_fallthru
    _
  // Predicated region
  $region18: #{cross_attention_pallas.7} parent=0 // pred_check
    _
  $region19: #{cross_attention_pallas.7} parent=0 // pred_check_branch
    %94 = sbr.rel (0) target = $region21
  $region20: #{cross_attention_pallas.7} parent=0 // pred_region
    _
  $region21: #{cross_attention_pallas.7} parent=0 // pred_fallthru
    _

// kernel: cross_attention_pallas.4
$region0: #{cross_attention_pallas.4}
  #allocation0 [shape = 'u32[]', space=smem, size = 0x4, offset = 0x4, fixed_abs, tag = 'smem constant byte address 0x4 - core index']
  #allocation1 [shape = 'u32[144,128]{1,0:T(1,128)}', space=vmem, size = 0x12000, scoped, tag = 'internal scratch']
  %s0 = inlined_call_operand.vmem [shape: f32[16,48], index: 0, kind: input, shape index: {}]
  %s1 = inlined_call_operand.vmem [shape: f32[16,4], index: 1, kind: input, shape index: {}]
  %s2 = inlined_call_operand.vmem [shape: f32[48,72], index: 2, kind: input, shape index: {}]
  %s3 = inlined_call_operand.vmem [shape: f32[4,72], index: 3, kind: input, shape index: {}]
  %s4 = inlined_call_operand.vmem [shape: f32[1,72], index: 4, kind: input, shape index: {}]
  %s5 = inlined_call_operand.vmem [shape: f32[16,72], index: 5, kind: output, shape index: {}]
  %s6 = sld [smem:[#allocation0]]
  $region30: #{cross_attention_pallas.4} parent=0
    _
  %s8 = ssub.s32 1, %s6
  %s9 = scalar_select 0, %s8, %s6
  // Predicated region
  $region2: #{cross_attention_pallas.4} parent=0 // pred_check
    _
  $region3: #{cross_attention_pallas.4} parent=0 // pred_check_branch
    %11 = sbr.rel (0) target = $region5
  $region4: #{cross_attention_pallas.4} parent=0 // pred_region
    _
  $region5: #{cross_attention_pallas.4} parent=0 // pred_fallthru
    _
  // Predicated region
  $region6: #{cross_attention_pallas.4} parent=0 // pred_check
    _
  $region7: #{cross_attention_pallas.4} parent=0 // pred_check_branch
    %13 = sbr.rel (0) target = $region9
  $region8: #{cross_attention_pallas.4} parent=0 // pred_region
    _
  $region9: #{cross_attention_pallas.4} parent=0 // pred_fallthru
    _
  // Predicated region
  $region10: #{cross_attention_pallas.4} parent=0 // pred_check
    _
  $region11: #{cross_attention_pallas.4} parent=0 // pred_check_branch
    %15 = sbr.rel (0) target = $region13
  $region12: #{cross_attention_pallas.4} parent=0 // pred_region
    _
  $region13: #{cross_attention_pallas.4} parent=0 // pred_fallthru
    _
  // Predicated region
  $region14: #{cross_attention_pallas.4} parent=0 // pred_check
    _
  $region15: #{cross_attention_pallas.4} parent=0 // pred_check_branch
    %17 = sbr.rel (0) target = $region17
  $region16: #{cross_attention_pallas.4} parent=0 // pred_region
    _
  $region17: #{cross_attention_pallas.4} parent=0 // pred_fallthru
    _
  // Predicated region
  $region18: #{cross_attention_pallas.4} parent=0 // pred_check
    _
  $region19: #{cross_attention_pallas.4} parent=0 // pred_check_branch
    %19 = sbr.rel (0) target = $region21
  $region20: #{cross_attention_pallas.4} parent=0 // pred_region
    _
  $region21: #{cross_attention_pallas.4} parent=0 // pred_fallthru
    _
  %v21 = vld [vmem:[%s0] sm:$0xff]
  %v22 = vld [vmem:[%s0 + $0x8] sm:$0xff]
  %v23 = vld [vmem:[%s2] sm:$0xff]
  %v24 = vld [vmem:[%s2 + $0x8] sm:$0xff]
  %v25 = vld [vmem:[%s2 + $0x10] sm:$0xff]
  %v26 = vld [vmem:[%s2 + $0x18] sm:$0xff]
  %v27 = vld [vmem:[%s2 + $0x20] sm:$0xff]
  %v28 = vld [vmem:[%s2 + $0x28] sm:$0xff]
  %v29 = vpack.c.bf16 %v22, %v21
  %v30 = vpack.c.bf16 %v24, %v23
  %v31 = vpack.c.bf16 %v26, %v25
  %v32 = vpack.c.bf16 %v28, %v27
  %v33 = vld [vmem:[%s1] sm:$0xff]
  %v34 = vld [vmem:[%s1 + $0x8] sm:$0xff]
  %v35 = vld [vmem:[%s3] sm:$0xf]
  %v36 = vpack.c.bf16 %v34, %v33
  %v37 = vpack.c.bf16 %v35, %v35
  %vm38 = vcmask 31744
  %v40 = vsel %vm38, %v36, 0
  %vm42 = vcmask 1041408
  %v44 = vsel %vm42, %v37, 0
  %46 = vmatprep.subr.bf16.mxu0 0
  %47 = vmatpush1.bf16.msra.mxu0 %v44
  %48 = vmatprep.subr.bf16.mxu0 0
  %49 = vmatpush1.bf16.msra.mxu0 0
  %50 = vmatprep.subr.bf16.mxu0 0
  %51 = vmatpush1.bf16.msra.mxu0 0
  %52 = vmatprep.subr.bf16.mxu0 0
  %53 = vmatpush1.bf16.msra.mxu0 0
  %54 = vmatprep.subr.bf16.mxu0 0
  %55 = vmatpush1.bf16.msra.mxu0 0
  %56 = vmatprep.subr.bf16.mxu0 0
  %57 = vmatpush1.bf16.msra.mxu0 0
  %58 = vmatprep.subr.bf16.mxu0 0
  %59 = vmatpush1.bf16.msra.mxu0 0
  %60 = vmatprep.subr.bf16.mxu0 0
  %61 = vmatpush1.bf16.msra.mxu0 0
  %62 = vmatprep.subr.bf16.mxu0 0
  %63 = vmatpush1.bf16.msra.mxu0 0
  %64 = vmatprep.subr.bf16.mxu0 0
  %65 = vmatpush1.bf16.msra.mxu0 0
  %66 = vmatprep.subr.bf16.mxu0 0
  %67 = vmatpush1.bf16.msra.mxu0 0
  %68 = vmatprep.subr.bf16.mxu0 0
  %69 = vmatpush1.bf16.msra.mxu0 0
  %70 = vmatprep.subr.bf16.mxu0 0
  %71 = vmatpush1.bf16.msra.mxu0 0
  %72 = vmatprep.subr.bf16.mxu0 0
  %73 = vmatpush1.bf16.msra.mxu0 0
  %74 = vmatprep.subr.bf16.mxu0 0
  %75 = vmatpush1.bf16.msra.mxu0 0
  %76 = vmatprep.subr.bf16.mxu0 0
  %77 = vmatpush1.bf16.msra.mxu0 0
  %78 = vmatprep.mubr.bf16.mxu0 0
  %79 = vmatmul.mubr.bf16.gmra.mrb[0].mxu0 %v40
  %v80 = vpop.f32.mrb[0].mxu0
  %v81 = vadd.f32 0.0, %v80
  %v82 = vpop.f32.mrb[0].mxu0
  %v83 = vpop.f32.mrb[0].mxu0
  %v84 = vadd.f32 0.0, %v83
  %v85 = vpop.f32.mrb[0].mxu0
  %86 = vdwg.mxu0
  %vm87 = vcmask 392192
  %v89 = vsel %vm87, %v29, 0
  %91 = vmatprep.subr.bf16.mxu0 0
  %92 = vmatpush1.bf16.msra.mxu0 %v30
  %93 = vmatprep.subr.bf16.mxu0 0
  %94 = vmatpush1.bf16.msra.mxu0 %v31
  %95 = vmatprep.subr.bf16.mxu0 0
  %96 = vmatpush1.bf16.msra.mxu0 %v32
  %97 = vmatprep.subr.bf16.mxu0 0
  %98 = vmatpush1.bf16.msra.mxu0 0
  %99 = vmatprep.subr.bf16.mxu0 0
  %100 = vmatpush1.bf16.msra.mxu0 0
  %101 = vmatprep.subr.bf16.mxu0 0
  %102 = vmatpush1.bf16.msra.mxu0 0
  %103 = vmatprep.subr.bf16.mxu0 0
  %104 = vmatpush1.bf16.msra.mxu0 0
  %105 = vmatprep.subr.bf16.mxu0 0
  %106 = vmatpush1.bf16.msra.mxu0 0
  %107 = vmatprep.subr.bf16.mxu0 0
  %108 = vmatpush1.bf16.msra.mxu0 0
  %109 = vmatprep.subr.bf16.mxu0 0
  %110 = vmatpush1.bf16.msra.mxu0 0
  %111 = vmatprep.subr.bf16.mxu0 0
  %112 = vmatpush1.bf16.msra.mxu0 0
  %113 = vmatprep.subr.bf16.mxu0 0
  %114 = vmatpush1.bf16.msra.mxu0 0
  %115 = vmatprep.subr.bf16.mxu0 0
  %116 = vmatpush1.bf16.msra.mxu0 0
  %117 = vmatprep.subr.bf16.mxu0 0
  %118 = vmatpush1.bf16.msra.mxu0 0
  %119 = vmatprep.subr.bf16.mxu0 0
  %120 = vmatpush1.bf16.msra.mxu0 0
  %121 = vmatprep.subr.bf16.mxu0 0
  %122 = vmatpush1.bf16.msra.mxu0 0
  %123 = vmatprep.mubr.bf16.mxu0 0
  %124 = vmatmul.mubr.bf16.gmra.mrb[0].mxu0 %v89
  %v125 = vpop.f32.mrb[0].mxu0
  %v126 = vadd.f32 %v81, %v125
  %v127 = vpop.f32.mrb[0].mxu0
  %v128 = vpop.f32.mrb[0].mxu0
  %v129 = vadd.f32 %v84, %v128
  %v130 = vpop.f32.mrb[0].mxu0
  %131 = vdwg.mxu0
  %v132 = vld [vmem:[%s4] sm:$0x1]
  %v134 = vlaneseq
  %v135 = vshrl.u32 %v134, 7
  %v136 = vsub.s32 0, %v135
  %v137 = vrot.slane %v132, %v136
  %v139 = vadd.f32 %v126, %v137
  %v140 = vadd.f32 %v129, %v137
  %vm141 = vcmask 588800
  %142 = vst.msk [vmem:[%s5] sm:$0xff] %vm141, %v139
  %143 = vst.msk [vmem:[%s5 + $0x8] sm:$0xff] %vm141, %v140
  // Predicated region
  $region22: #{cross_attention_pallas.4} parent=0 // pred_check
    _
  $region23: #{cross_attention_pallas.4} parent=0 // pred_check_branch
    %145 = sbr.rel (0) target = $region25
  $region24: #{cross_attention_pallas.4} parent=0 // pred_region
    _
  $region25: #{cross_attention_pallas.4} parent=0 // pred_fallthru
    _
  // Predicated region
  $region26: #{cross_attention_pallas.4} parent=0 // pred_check
    _
  $region27: #{cross_attention_pallas.4} parent=0 // pred_check_branch
    %147 = sbr.rel (0) target = $region29
  $region28: #{cross_attention_pallas.4} parent=0 // pred_region
    _
  $region29: #{cross_attention_pallas.4} parent=0 // pred_fallthru
    _

// kernel: cross_attention_pallas.6
$region0: #{cross_attention_pallas.6}
  #allocation0 [shape = 'u32[]', space=smem, size = 0x4, offset = 0x4, fixed_abs, tag = 'smem constant byte address 0x4 - core index']
  #allocation1 [shape = 'u32[144,128]{1,0:T(1,128)}', space=vmem, size = 0x12000, scoped, tag = 'internal scratch']
  %s0 = inlined_call_operand.vmem [shape: f32[2,8,72], index: 0, kind: input, shape index: {}]
  %s1 = inlined_call_operand.vmem [shape: f32[2,16,144], index: 1, kind: input, shape index: {}]
  %s2 = inlined_call_operand.vmem [shape: f32[2,8,72], index: 2, kind: output, shape index: {}]
  %s3 = sld [smem:[#allocation0]]
  $region41: #{cross_attention_pallas.6} parent=0
    _
  %s5 = ssub.s32 1, %s3
  %s6 = scalar_select 0, %s5, %s3
  loop: start=0, step=1, limit=4
  $region2: #{cross_attention_pallas.6} parent=0 // loop_pre_header
    _
  $region3: #{cross_attention_pallas.6} parent=0 // loop_header
    %s8 = sphi 0, %s12
    %p9 = scmp.ge.s32.totalorder %s8, 4
    %s15 = sphi 0, %s27
    %s16 = sphi 0, %s23
    %s17 = sphi 0, %s15
    %s18 = sphi 0, %s16
    %s19 = sphi 0, %s17
    %s20 = sphi 0, %s18
    %s32 = sphi 0, %s34
    %s35 = sphi 0, %s32
    %s36 = sphi 0, %s35
    %s52 = sphi 0, %s36
    %s58 = sphi 0, %s60
    %s61 = sphi 0, %s58
    %s62 = sphi 0, %s61
    %s78 = sphi 0, %s62
    %s86 = sphi 0, %s88
    %s89 = sphi 0, %s86
    %s90 = sphi 0, %s89
    %s106 = sphi 0, %s90
  $region4: #{cross_attention_pallas.6} parent=0 // loop_header_branch
    %11 = sbr.rel (%p9) target = $region8
  $region5: #{cross_attention_pallas.6} parent=0 // loop_body
    %s13 = ssub.s32 %s8, 1
    %s14 = ssub.s32 %s8, 2
    %s21 = sadd.s32 1, %s16
    %p22 = scmp.ge.s32.totalorder %s21, 1
    %s23 = scalar_select %p22, 0, %s21
    %s24 = sadd.s32 1, %s15
    %s25 = scalar_select %p22, %s24, %s15
    %p26 = scmp.ge.s32.totalorder %s25, 2
    %s27 = scalar_select %p26, 0, %s25
    %s28 = ssub.s32 %s15, %s27
    %s29 = ssub.s32 %s16, %s23
    %s30 = sor.u32 %s28, %s29
    %p31 = scmp.eq.s32.totalorder %s30, 0
    %s33 = sadd.s32 %s32, 1
    %s34 = scalar_select %p31, %s32, %s33
    %p37 = pneg %p31
    %p38 = scmp.eq.s32.totalorder %s8, 1
    %p39 = por %p37, %p38
    %p40 = scmp.ne.s32.totalorder %s32, %s35
    %p41 = scmp.eq.s32.totalorder %s8, 0
    %p42 = por %p40, %p41
    %p43 = scmp.ne.s32.totalorder %s32, %s35
    %p44 = scmp.eq.s32.totalorder %s13, 1
    %p45 = por %p43, %p44
    %p46 = scmp.ne.s32.totalorder %s35, %s36
    %p47 = scmp.eq.s32.totalorder %s13, 0
    %p48 = por %p46, %p47
    %p49 = scmp.ne.s32.totalorder %s35, %s36
    %p50 = scmp.eq.s32.totalorder %s14, 1
    %p51 = por %p49, %p50
    %p53 = scmp.ne.s32.totalorder %s36, %s52
    %p54 = scmp.eq.s32.totalorder %s14, 0
    %p55 = por %p53, %p54
    %s56 = ssub.s32 %s15, %s27
    %p57 = scmp.eq.s32.totalorder %s56, 0
    %s59 = sadd.s32 %s58, 1
    %s60 = scalar_select %p57, %s58, %s59
    %p63 = pneg %p57
    %p64 = scmp.eq.s32.totalorder %s8, 1
    %p65 = por %p63, %p64
    %p66 = scmp.ne.s32.totalorder %s58, %s61
    %p67 = scmp.eq.s32.totalorder %s8, 0
    %p68 = por %p66, %p67
    %p69 = scmp.ne.s32.totalorder %s58, %s61
    %p70 = scmp.eq.s32.totalorder %s13, 1
    %p71 = por %p69, %p70
    %p72 = scmp.ne.s32.totalorder %s61, %s62
    %p73 = scmp.eq.s32.totalorder %s13, 0
    %p74 = por %p72, %p73
    %p75 = scmp.ne.s32.totalorder %s61, %s62
    %p76 = scmp.eq.s32.totalorder %s14, 1
    %p77 = por %p75, %p76
    %p79 = scmp.ne.s32.totalorder %s62, %s78
    %p80 = scmp.eq.s32.totalorder %s14, 0
    %p81 = por %p79, %p80
    %s82 = ssub.s32 %s15, %s27
    %s83 = ssub.s32 %s16, %s23
    %s84 = sor.u32 %s82, %s83
    %p85 = scmp.eq.s32.totalorder %s84, 0
    %s87 = sadd.s32 %s86, 1
    %s88 = scalar_select %p85, %s86, %s87
    %p91 = pneg %p85
    %p92 = scmp.eq.s32.totalorder %s8, 1
    %p93 = por %p91, %p92
    %p94 = scmp.ne.s32.totalorder %s86, %s89
    %p95 = scmp.eq.s32.totalorder %s8, 0
    %p96 = por %p94, %p95
    %p97 = scmp.ne.s32.totalorder %s86, %s89
    %p98 = scmp.eq.s32.totalorder %s13, 1
    %p99 = por %p97, %p98
    %p100 = scmp.ne.s32.totalorder %s89, %s90
    %p101 = scmp.eq.s32.totalorder %s13, 0
    %p102 = por %p100, %p101
    %p103 = scmp.ne.s32.totalorder %s89, %s90
    %p104 = scmp.eq.s32.totalorder %s14, 1
    %p105 = por %p103, %p104
    %p107 = scmp.ne.s32.totalorder %s90, %s106
    %p108 = scmp.eq.s32.totalorder %s14, 0
    %p109 = por %p107, %p108
    %p110 = scmp.le.s32.totalorder 1, %s8
    %p111 = scmp.lt.s32.totalorder %s8, 3
    %p112 = pnand %p110, %p111
    %p113 = pneg %p112
    // Predicated region
    $region9: #{cross_attention_pallas.6} parent=5 // pred_check
      _
    $region10: #{cross_attention_pallas.6} parent=5 // pred_check_branch
      %115 = sbr.rel (%p112) target = $region12
    $region11: #{cross_attention_pallas.6} parent=5 // pred_region
      %s116 = ssub.s32 %s8, 1
    $region12: #{cross_attention_pallas.6} parent=5 // pred_fallthru
      _
    %p117 = scmp.lt.s32.totalorder %s8, 2
    // Predicated region
    $region13: #{cross_attention_pallas.6} parent=5 // pred_check
      %p118 = pneg %p117
    $region14: #{cross_attention_pallas.6} parent=5 // pred_check_branch
      %120 = sbr.rel (%p118) target = $region16
    $region15: #{cross_attention_pallas.6} parent=5 // pred_region
      // Predicated region
      $region17: #{cross_attention_pallas.6} parent=15 // pred_check
        %p121 = pneg %p42
      $region18: #{cross_attention_pallas.6} parent=15 // pred_check_branch
        %123 = sbr.rel (%p121) target = $region20
      $region19: #{cross_attention_pallas.6} parent=15 // pred_region
        %p124 = scmp.lt.s32.totalorder %s15, 1
        %s125 = scalar_select %p124, %s15, 1
        %p126 = scmp.lt.s32.totalorder %s16, 0
        %s127 = scalar_select %p126, %s16, 0
        %s128 = sadd.s32 %s127, %s125
        %s129 = smul.addr %s128, 8
        %s130 = scalar_lea.vmem %s0, %s129
      $region20: #{cross_attention_pallas.6} parent=15 // pred_fallthru
        _
      // Predicated region
      $region21: #{cross_attention_pallas.6} parent=15 // pred_check
        %p131 = pneg %p68
      $region22: #{cross_attention_pallas.6} parent=15 // pred_check_branch
        %133 = sbr.rel (%p131) target = $region24
      $region23: #{cross_attention_pallas.6} parent=15 // pred_region
        %p134 = scmp.lt.s32.totalorder %s15, 1
        %s135 = scalar_select %p134, %s15, 1
        %s136 = smul.addr %s135, 4
        %s137 = smul.addr %s136, 8
        %s138 = scalar_lea.vmem %s1, %s137
      $region24: #{cross_attention_pallas.6} parent=15 // pred_fallthru
        _
    $region16: #{cross_attention_pallas.6} parent=5 // pred_fallthru
      _
    %p139 = scmp.le.s32.totalorder 1, %s8
    %p140 = scmp.lt.s32.totalorder %s8, 3
    %p141 = pnand %p139, %p140
    %p142 = pneg %p141
    // Predicated region
    $region25: #{cross_attention_pallas.6} parent=5 // pred_check
      _
    $region26: #{cross_attention_pallas.6} parent=5 // pred_check_branch
      %144 = sbr.rel (%p141) target = $region28
    $region27: #{cross_attention_pallas.6} parent=5 // pred_region
      %s145 = ssub.s32 %s8, 1
      %p146 = scmp.lt.s32.totalorder %s17, 1
      %s147 = scalar_select %p146, %s17, 1
      %p148 = scmp.lt.s32.totalorder %s18, 0
      %s149 = scalar_select %p148, %s18, 0
      %s150 = sadd.s32 %s149, %s147
      %s151 = smul.addr %s150, 8
      %s152 = scalar_lea.vmem %s0, %s151
      %p153 = pneg %p48
      %p154 = pneg %p45
      %p155 = scmp.lt.s32.totalorder %s17, 1
      %s156 = scalar_select %p155, %s17, 1
      %s157 = smul.addr %s156, 4
      %s158 = smul.addr %s157, 8
      %s159 = scalar_lea.vmem %s1, %s158
      %p160 = pneg %p74
      %p161 = pneg %p71
      %p162 = pneg %p102
      %p163 = pneg %p99
      %p164 = scmp.lt.s32.totalorder %s17, 1
      %s165 = scalar_select %p164, %s17, 1
      %p166 = scmp.lt.s32.totalorder %s18, 0
      %s167 = scalar_select %p166, %s18, 0
      %s168 = sadd.s32 %s167, %s165
      %s169 = smul.addr %s168, 8
      %s170 = scalar_lea.vmem %s2, %s169
      %p171 = scmp.lt.s32.totalorder %s17, 1
      %s172 = scalar_select %p171, %s17, 1
      %p173 = scmp.lt.s32.totalorder %s18, 0
      %s174 = scalar_select %p173, %s18, 0
      %s175 = sadd.s32 %s174, %s172
      %s176 = smul.addr %s175, 8
      %s177 = scalar_lea.vmem %s0, %s176
      %p178 = scmp.lt.s32.totalorder %s17, 1
      %s179 = scalar_select %p178, %s17, 1
      %s180 = smul.addr %s179, 4
      %s181 = smul.addr %s180, 8
      %s182 = scalar_lea.vmem %s1, %s181
      %p183 = scmp.lt.s32.totalorder %s17, 1
      %s184 = scalar_select %p183, %s17, 1
      %p185 = scmp.lt.s32.totalorder %s18, 0
      %s186 = scalar_select %p185, %s18, 0
      %s187 = sadd.s32 %s186, %s184
      %s188 = smul.addr %s187, 8
      %s189 = scalar_lea.vmem %s2, %s188
      %v191 = vld [vmem:[%s177] sm:$0xff]
      %v192 = vld [vmem:[%s182] sm:$0xff]
      %v193 = vld [vmem:[%s182 + $0x10] sm:$0xff]
      %v194 = vpack.c.bf16 %v191, %v191
      %v195 = vpack.c.bf16 %v193, %v192
      %vm196 = vcmask 293888
      %v198 = vsel %vm196, %v194, 0
      %v201 = vsel %vm196, %v195, 0
      %203 = vmatprep.subr.bf16.mxu0 0
      %204 = vmatpush1.bf16.xpose.msra.mxu0 %v201
      %205 = vmatprep.subr.bf16.mxu0 0
      %206 = vmatpush1.bf16.xpose.msra.mxu0 0
      %207 = vmatprep.subr.bf16.mxu0 0
      %208 = vmatpush1.bf16.xpose.msra.mxu0 0
      %209 = vmatprep.subr.bf16.mxu0 0
      %210 = vmatpush1.bf16.xpose.msra.mxu0 0
      %211 = vmatprep.subr.bf16.mxu0 0
      %212 = vmatpush1.bf16.xpose.msra.mxu0 0
      %213 = vmatprep.subr.bf16.mxu0 0
      %214 = vmatpush1.bf16.xpose.msra.mxu0 0
      %215 = vmatprep.subr.bf16.mxu0 0
      %216 = vmatpush1.bf16.xpose.msra.mxu0 0
      %217 = vmatprep.subr.bf16.mxu0 0
      %218 = vmatpush1.bf16.xpose.msra.mxu0 0
      %219 = vmatprep.subr.bf16.mxu0 0
      %220 = vmatpush1.bf16.xpose.msra.mxu0 0
      %221 = vmatprep.subr.bf16.mxu0 0
      %222 = vmatpush1.bf16.xpose.msra.mxu0 0
      %223 = vmatprep.subr.bf16.mxu0 0
      %224 = vmatpush1.bf16.xpose.msra.mxu0 0
      %225 = vmatprep.subr.bf16.mxu0 0
      %226 = vmatpush1.bf16.xpose.msra.mxu0 0
      %227 = vmatprep.subr.bf16.mxu0 0
      %228 = vmatpush1.bf16.xpose.msra.mxu0 0
      %229 = vmatprep.subr.bf16.mxu0 0
      %230 = vmatpush1.bf16.xpose.msra.mxu0 0
      %231 = vmatprep.subr.bf16.mxu0 0
      %232 = vmatpush1.bf16.xpose.msra.mxu0 0
      %233 = vmatprep.subr.bf16.mxu0 0
      %234 = vmatpush1.bf16.xpose.msra.mxu0 0
      %235 = vmatprep.mubr.bf16.mxu0 0
      %236 = vmatmul.mubr.bf16.gmra.mrb[0].mxu0 %v198
      %v237 = vpop.f32.mrb[0].mxu0
      %v238 = vadd.f32 0.0, %v237
      %v239 = vpop.f32.mrb[0].mxu0
      %v240 = vpop.f32.mrb[0].mxu0
      %v241 = vpop.f32.mrb[0].mxu0
      %242 = vdwg.mxu0
      %vm243 = vcmask 130048
      %v244 = vsel %vm243, %v238, -inf
      %245 = vmax.xlane.f32.xlu0 %v244
      %v246 = vpop.xlane.xlu0 %245
      %v247 = vsub.f32 %v238, %v246
      %v248 = vmul.f32 %v247, 1.442695
      %v249 = vpow.pop %v248
      %v250 = vsel %vm243, %v249, 0.0
      %251 = vadd.xlane.f32.xlu0 %v250
      %v252 = vpop.xlane.xlu0 %251
      %v253 = vpack.c.bf16 %v249, %v249
      %255 = vrot.lane.b32.xlu0 %v195, 56
      %v256 = vpop.permute.xlu0 %255
      %v259 = vsel %vm243, %v253, 0
      %261 = vmatprep.subr.bf16.mxu0 0
      %262 = vmatpush1.bf16.msra.mxu0 %v256
      %263 = vmatprep.subr.bf16.mxu0 0
      %264 = vmatpush1.bf16.msra.mxu0 0
      %265 = vmatprep.subr.bf16.mxu0 0
      %266 = vmatpush1.bf16.msra.mxu0 0
      %267 = vmatprep.subr.bf16.mxu0 0
      %268 = vmatpush1.bf16.msra.mxu0 0
      %269 = vmatprep.subr.bf16.mxu0 0
      %270 = vmatpush1.bf16.msra.mxu0 0
      %271 = vmatprep.subr.bf16.mxu0 0
      %272 = vmatpush1.bf16.msra.mxu0 0
      %273 = vmatprep.subr.bf16.mxu0 0
      %274 = vmatpush1.bf16.msra.mxu0 0
      %275 = vmatprep.subr.bf16.mxu0 0
      %276 = vmatpush1.bf16.msra.mxu0 0
      %277 = vmatprep.subr.bf16.mxu0 0
      %278 = vmatpush1.bf16.msra.mxu0 0
      %279 = vmatprep.subr.bf16.mxu0 0
      %280 = vmatpush1.bf16.msra.mxu0 0
      %281 = vmatprep.subr.bf16.mxu0 0
      %282 = vmatpush1.bf16.msra.mxu0 0
      %283 = vmatprep.subr.bf16.mxu0 0
      %284 = vmatpush1.bf16.msra.mxu0 0
      %285 = vmatprep.subr.bf16.mxu0 0
      %286 = vmatpush1.bf16.msra.mxu0 0
      %287 = vmatprep.subr.bf16.mxu0 0
      %288 = vmatpush1.bf16.msra.mxu0 0
      %289 = vmatprep.subr.bf16.mxu0 0
      %290 = vmatpush1.bf16.msra.mxu0 0
      %291 = vmatprep.subr.bf16.mxu0 0
      %292 = vmatpush1.bf16.msra.mxu0 0
      %293 = vmatprep.mubr.bf16.mxu0 0
      %294 = vmatmul.mubr.bf16.gmra.mrb[0].mxu0 %v259
      %v295 = vpop.f32.mrb[0].mxu0
      %v296 = vadd.f32 0.0, %v295
      %v297 = vpop.f32.mrb[0].mxu0
      %v298 = vpop.f32.mrb[0].mxu0
      %v299 = vpop.f32.mrb[0].mxu0
      %300 = vdwg.mxu0
      %v301 = vrcp.pop %v252
      %v302 = vmul.f32 %v296, %v301
      %v303 = vld [vmem:[%s182] sm:$0xff]
      %v304 = vld [vmem:[%s182 + $0x8] sm:$0xff]
      %v305 = vld [vmem:[%s182 + $0x10] sm:$0xff]
      %v306 = vld [vmem:[%s182 + $0x18] sm:$0xff]
      %308 = vrot.lane.b32.xlu0 %v194, 92
      %v309 = vpop.permute.xlu0 %308
      %310 = vrot.lane.b32.xlu0 %v195, 92
      %v311 = vpop.permute.xlu0 %310
      %v313 = vsel %vm196, %v309, 0
      %v316 = vsel %vm196, %v311, 0
      %318 = vmatprep.subr.bf16.mxu0 0
      %319 = vmatpush1.bf16.xpose.msra.mxu0 %v316
      %320 = vmatprep.subr.bf16.mxu0 0
      %321 = vmatpush1.bf16.xpose.msra.mxu0 0
      %322 = vmatprep.subr.bf16.mxu0 0
      %323 = vmatpush1.bf16.xpose.msra.mxu0 0
      %324 = vmatprep.subr.bf16.mxu0 0
      %325 = vmatpush1.bf16.xpose.msra.mxu0 0
      %326 = vmatprep.subr.bf16.mxu0 0
      %327 = vmatpush1.bf16.xpose.msra.mxu0 0
      %328 = vmatprep.subr.bf16.mxu0 0
      %329 = vmatpush1.bf16.xpose.msra.mxu0 0
      %330 = vmatprep.subr.bf16.mxu0 0
      %331 = vmatpush1.bf16.xpose.msra.mxu0 0
      %332 = vmatprep.subr.bf16.mxu0 0
      %333 = vmatpush1.bf16.xpose.msra.mxu0 0
      %334 = vmatprep.subr.bf16.mxu0 0
      %335 = vmatpush1.bf16.xpose.msra.mxu0 0
      %336 = vmatprep.subr.bf16.mxu0 0
      %337 = vmatpush1.bf16.xpose.msra.mxu0 0
      %338 = vmatprep.subr.bf16.mxu0 0
      %339 = vmatpush1.bf16.xpose.msra.mxu0 0
      %340 = vmatprep.subr.bf16.mxu0 0
      %341 = vmatpush1.bf16.xpose.msra.mxu0 0
      %342 = vmatprep.subr.bf16.mxu0 0
      %343 = vmatpush1.bf16.xpose.msra.mxu0 0
      %344 = vmatprep.subr.bf16.mxu0 0
      %345 = vmatpush1.bf16.xpose.msra.mxu0 0
      %346 = vmatprep.subr.bf16.mxu0 0
      %347 = vmatpush1.bf16.xpose.msra.mxu0 0
      %348 = vmatprep.subr.bf16.mxu0 0
      %349 = vmatpush1.bf16.xpose.msra.mxu0 0
      %350 = vmatprep.mubr.bf16.mxu0 0
      %351 = vmatmul.mubr.bf16.gmra.mrb[0].mxu0 %v313
      %v352 = vpop.f32.mrb[0].mxu0
      %v353 = vadd.f32 0.0, %v352
      %v354 = vpop.f32.mrb[0].mxu0
      %v355 = vpop.f32.mrb[0].mxu0
      %v356 = vpop.f32.mrb[0].mxu0
      %357 = vdwg.mxu0
      %v358 = vsel %vm243, %v353, -inf
      %359 = vmax.xlane.f32.xlu0 %v358
      %v360 = vpop.xlane.xlu0 %359
      %v361 = vsub.f32 %v353, %v360
      %v362 = vmul.f32 %v361, 1.442695
      %v363 = vpow.pop %v362
      %v364 = vsel %vm243, %v363, 0.0
      %365 = vadd.xlane.f32.xlu0 %v364
      %v366 = vpop.xlane.xlu0 %365
      %v367 = vpack.c.bf16 %v363, %v363
      %v368 = vpack.c.bf16 %v305, %v303
      %v369 = vpack.c.bf16 %v306, %v304
      %372 = vrot.lane.b32.xlu0 %v368, 20
      %v373 = vpop.permute.xlu0 %372
      %374 = vrot.lane.b32.xlu0 %v369, 20
      %v375 = vpop.permute.xlu0 %374
      %vm376 = vcmask 162816
      %v377 = vsel %vm376, %v373, %v375
      %v380 = vsel %vm243, %v367, 0
      %382 = vmatprep.subr.bf16.mxu0 0
      %383 = vmatpush1.bf16.msra.mxu0 %v377
      %384 = vmatprep.subr.bf16.mxu0 0
      %385 = vmatpush1.bf16.msra.mxu0 0
      %386 = vmatprep.subr.bf16.mxu0 0
      %387 = vmatpush1.bf16.msra.mxu0 0
      %388 = vmatprep.subr.bf16.mxu0 0
      %389 = vmatpush1.bf16.msra.mxu0 0
      %390 = vmatprep.subr.bf16.mxu0 0
      %391 = vmatpush1.bf16.msra.mxu0 0
      %392 = vmatprep.subr.bf16.mxu0 0
      %393 = vmatpush1.bf16.msra.mxu0 0
      %394 = vmatprep.subr.bf16.mxu0 0
      %395 = vmatpush1.bf16.msra.mxu0 0
      %396 = vmatprep.subr.bf16.mxu0 0
      %397 = vmatpush1.bf16.msra.mxu0 0
      %398 = vmatprep.subr.bf16.mxu0 0
      %399 = vmatpush1.bf16.msra.mxu0 0
      %400 = vmatprep.subr.bf16.mxu0 0
      %401 = vmatpush1.bf16.msra.mxu0 0
      %402 = vmatprep.subr.bf16.mxu0 0
      %403 = vmatpush1.bf16.msra.mxu0 0
      %404 = vmatprep.subr.bf16.mxu0 0
      %405 = vmatpush1.bf16.msra.mxu0 0
      %406 = vmatprep.subr.bf16.mxu0 0
      %407 = vmatpush1.bf16.msra.mxu0 0
      %408 = vmatprep.subr.bf16.mxu0 0
      %409 = vmatpush1.bf16.msra.mxu0 0
      %410 = vmatprep.subr.bf16.mxu0 0
      %411 = vmatpush1.bf16.msra.mxu0 0
      %412 = vmatprep.subr.bf16.mxu0 0
      %413 = vmatpush1.bf16.msra.mxu0 0
      %414 = vmatprep.mubr.bf16.mxu0 0
      %415 = vmatmul.mubr.bf16.gmra.mrb[0].mxu0 %v380
      %v416 = vpop.f32.mrb[0].mxu0
      %v417 = vadd.f32 0.0, %v416
      %v418 = vpop.f32.mrb[0].mxu0
      %v419 = vpop.f32.mrb[0].mxu0
      %v420 = vpop.f32.mrb[0].mxu0
      %421 = vdwg.mxu0
      %v422 = vrcp.pop %v366
      %v423 = vmul.f32 %v417, %v422
      %425 = vrot.lane.b32.xlu0 %v423, 36
      %v426 = vpop.permute.xlu0 %425
      %v428 = vsel %vm196, %v302, %v426
      %vm429 = vcmask 588800
      %430 = vst.msk [vmem:[%s189] sm:$0xff] %vm429, %v428
      %p431 = scmp.lt.s32.totalorder %s17, 1
      %s432 = scalar_select %p431, %s17, 1
      %p433 = scmp.lt.s32.totalorder %s18, 0
      %s434 = scalar_select %p433, %s18, 0
      %s435 = sadd.s32 %s434, %s432
      %s436 = smul.addr %s435, 8
      %s437 = scalar_lea.vmem %s2, %s436
      // Predicated region
      $region29: #{cross_attention_pallas.6} parent=27 // pred_check
        %p438 = pneg %p99
      $region30: #{cross_attention_pallas.6} parent=27 // pred_check_branch
        %440 = sbr.rel (%p438) target = $region32
      $region31: #{cross_attention_pallas.6} parent=27 // pred_region
        _
      $region32: #{cross_attention_pallas.6} parent=27 // pred_fallthru
        _
    $region28: #{cross_attention_pallas.6} parent=5 // pred_fallthru
      _
    %p441 = scmp.le.s32.totalorder 2, %s8
    // Predicated region
    $region33: #{cross_attention_pallas.6} parent=5 // pred_check
      %p442 = pneg %p441
    $region34: #{cross_attention_pallas.6} parent=5 // pred_check_branch
      %444 = sbr.rel (%p442) target = $region36
    $region35: #{cross_attention_pallas.6} parent=5 // pred_region
      %s445 = ssub.s32 %s8, 2
      // Predicated region
      $region37: #{cross_attention_pallas.6} parent=35 // pred_check
        %p446 = pneg %p105
      $region38: #{cross_attention_pallas.6} parent=35 // pred_check_branch
        %448 = sbr.rel (%p446) target = $region40
      $region39: #{cross_attention_pallas.6} parent=35 // pred_region
        %p449 = scmp.lt.s32.totalorder %s19, 1
        %s450 = scalar_select %p449, %s19, 1
        %p451 = scmp.lt.s32.totalorder %s20, 0
        %s452 = scalar_select %p451, %s20, 0
        %s453 = sadd.s32 %s452, %s450
        %s454 = smul.addr %s453, 8
        %s455 = scalar_lea.vmem %s2, %s454
      $region40: #{cross_attention_pallas.6} parent=35 // pred_fallthru
        _
    $region36: #{cross_attention_pallas.6} parent=5 // pred_fallthru
      _
  $region6: #{cross_attention_pallas.6} parent=0 // loop_footer
    %s12 = sadd.s32 1, %s8
  $region7: #{cross_attention_pallas.6} parent=0 // loop_footer_branch
    %7 = sbr.rel target = $region3
  $region8: #{cross_attention_pallas.6} parent=0 // loop_exit
    _

// kernel: cross_attention_pallas.5
$region0: #{cross_attention_pallas.5}
  #allocation0 [shape = 'u32[]', space=smem, size = 0x4, offset = 0x4, fixed_abs, tag = 'smem constant byte address 0x4 - core index']
  #allocation1 [shape = 'u32[144,128]{1,0:T(1,128)}', space=vmem, size = 0x12000, scoped, tag = 'internal scratch']
  %s0 = inlined_call_operand.vmem [shape: f32[32,80], index: 0, kind: input, shape index: {}]
  %s1 = inlined_call_operand.vmem [shape: f32[32,6], index: 1, kind: input, shape index: {}]
  %s2 = inlined_call_operand.vmem [shape: f32[80,144], index: 2, kind: input, shape index: {}]
  %s3 = inlined_call_operand.vmem [shape: f32[6,144], index: 3, kind: input, shape index: {}]
  %s4 = inlined_call_operand.vmem [shape: f32[1,144], index: 4, kind: input, shape index: {}]
  %s5 = inlined_call_operand.vmem [shape: f32[32,144], index: 5, kind: output, shape index: {}]
  %s6 = sld [smem:[#allocation0]]
  $region30: #{cross_attention_pallas.5} parent=0
    _
  %s8 = ssub.s32 1, %s6
  %s9 = scalar_select 0, %s8, %s6
  // Predicated region
  $region2: #{cross_attention_pallas.5} parent=0 // pred_check
    _
  $region3: #{cross_attention_pallas.5} parent=0 // pred_check_branch
    %11 = sbr.rel (0) target = $region5
  $region4: #{cross_attention_pallas.5} parent=0 // pred_region
    _
  $region5: #{cross_attention_pallas.5} parent=0 // pred_fallthru
    _
  // Predicated region
  $region6: #{cross_attention_pallas.5} parent=0 // pred_check
    _
  $region7: #{cross_attention_pallas.5} parent=0 // pred_check_branch
    %13 = sbr.rel (0) target = $region9
  $region8: #{cross_attention_pallas.5} parent=0 // pred_region
    _
  $region9: #{cross_attention_pallas.5} parent=0 // pred_fallthru
    _
  // Predicated region
  $region10: #{cross_attention_pallas.5} parent=0 // pred_check
    _
  $region11: #{cross_attention_pallas.5} parent=0 // pred_check_branch
    %15 = sbr.rel (0) target = $region13
  $region12: #{cross_attention_pallas.5} parent=0 // pred_region
    _
  $region13: #{cross_attention_pallas.5} parent=0 // pred_fallthru
    _
  // Predicated region
  $region14: #{cross_attention_pallas.5} parent=0 // pred_check
    _
  $region15: #{cross_attention_pallas.5} parent=0 // pred_check_branch
    %17 = sbr.rel (0) target = $region17
  $region16: #{cross_attention_pallas.5} parent=0 // pred_region
    _
  $region17: #{cross_attention_pallas.5} parent=0 // pred_fallthru
    _
  // Predicated region
  $region18: #{cross_attention_pallas.5} parent=0 // pred_check
    _
  $region19: #{cross_attention_pallas.5} parent=0 // pred_check_branch
    %19 = sbr.rel (0) target = $region21
  $region20: #{cross_attention_pallas.5} parent=0 // pred_region
    _
  $region21: #{cross_attention_pallas.5} parent=0 // pred_fallthru
    _
  %v21 = vld [vmem:[%s0] sm:$0xff]
  %v22 = vld [vmem:[%s0 + $0x8] sm:$0xff]
  %v23 = vld [vmem:[%s0 + $0x10] sm:$0xff]
  %v24 = vld [vmem:[%s0 + $0x18] sm:$0xff]
  %v25 = vld [vmem:[%s2] sm:$0xff]
  %v26 = vld [vmem:[%s2 + $0x8] sm:$0xff]
  %v27 = vld [vmem:[%s2 + $0x10] sm:$0xff]
  %v28 = vld [vmem:[%s2 + $0x18] sm:$0xff]
  %v29 = vld [vmem:[%s2 + $0x20] sm:$0xff]
  %v30 = vld [vmem:[%s2 + $0x28] sm:$0xff]
  %v31 = vld [vmem:[%s2 + $0x30] sm:$0xff]
  %v32 = vld [vmem:[%s2 + $0x38] sm:$0xff]
  %v33 = vld [vmem:[%s2 + $0x40] sm:$0xff]
  %v34 = vld [vmem:[%s2 + $0x48] sm:$0xff]
  %v35 = vld [vmem:[%s2 + $0x50] sm:$0xff]
  %v36 = vld [vmem:[%s2 + $0x58] sm:$0xff]
  %v37 = vld [vmem:[%s2 + $0x60] sm:$0xff]
  %v38 = vld [vmem:[%s2 + $0x68] sm:$0xff]
  %v39 = vld [vmem:[%s2 + $0x70] sm:$0xff]
  %v40 = vld [vmem:[%s2 + $0x78] sm:$0xff]
  %v41 = vld [vmem:[%s2 + $0x80] sm:$0xff]
  %v42 = vld [vmem:[%s2 + $0x88] sm:$0xff]
  %v43 = vld [vmem:[%s2 + $0x90] sm:$0xff]
  %v44 = vld [vmem:[%s2 + $0x98] sm:$0xff]
  %v45 = vpack.c.bf16 %v22, %v21
  %v46 = vpack.c.bf16 %v24, %v23
  %v47 = vpack.c.bf16 %v27, %v25
  %v48 = vpack.c.bf16 %v28, %v26
  %v49 = vpack.c.bf16 %v31, %v29
  %v50 = vpack.c.bf16 %v32, %v30
  %v51 = vpack.c.bf16 %v35, %v33
  %v52 = vpack.c.bf16 %v36, %v34
  %v53 = vpack.c.bf16 %v39, %v37
  %v54 = vpack.c.bf16 %v40, %v38
  %v55 = vpack.c.bf16 %v43, %v41
  %v56 = vpack.c.bf16 %v44, %v42
  %v57 = vld [vmem:[%s1] sm:$0xff]
  %v58 = vld [vmem:[%s1 + $0x8] sm:$0xff]
  %v59 = vld [vmem:[%s1 + $0x10] sm:$0xff]
  %v60 = vld [vmem:[%s1 + $0x18] sm:$0xff]
  %v61 = vld [vmem:[%s3] sm:$0x3f]
  %v62 = vld [vmem:[%s3 + $0x8] sm:$0x3f]
  %v63 = vpack.c.bf16 %v58, %v57
  %v64 = vpack.c.bf16 %v60, %v59
  %v65 = vpack.c.bf16 %v61, %v61
  %v66 = vpack.c.bf16 %v62, %v62
  %vm67 = vcmask 48128
  %v69 = vsel %vm67, %v63, 0
  %v72 = vsel %vm67, %v64, 0
  %vm74 = vcmask 1042432
  %v76 = vsel %vm74, %v65, 0
  %v79 = vsel %vm74, %v66, 0
  %81 = vmatprep.subr.bf16.mxu0 %v79
  %82 = vmatpush1.bf16.msra.mxu0 %v76
  %83 = vmatprep.subr.bf16.mxu0 0
  %84 = vmatpush1.bf16.msra.mxu0 0
  %85 = vmatprep.subr.bf16.mxu0 0
  %86 = vmatpush1.bf16.msra.mxu0 0
  %87 = vmatprep.subr.bf16.mxu0 0
  %88 = vmatpush1.bf16.msra.mxu0 0
  %89 = vmatprep.subr.bf16.mxu0 0
  %90 = vmatpush1.bf16.msra.mxu0 0
  %91 = vmatprep.subr.bf16.mxu0 0
  %92 = vmatpush1.bf16.msra.mxu0 0
  %93 = vmatprep.subr.bf16.mxu0 0
  %94 = vmatpush1.bf16.msra.mxu0 0
  %95 = vmatprep.subr.bf16.mxu0 0
  %96 = vmatpush1.bf16.msra.mxu0 0
  %97 = vmatprep.subr.bf16.mxu0 0
  %98 = vmatpush1.bf16.msra.mxu0 0
  %99 = vmatprep.subr.bf16.mxu0 0
  %100 = vmatpush1.bf16.msra.mxu0 0
  %101 = vmatprep.subr.bf16.mxu0 0
  %102 = vmatpush1.bf16.msra.mxu0 0
  %103 = vmatprep.subr.bf16.mxu0 0
  %104 = vmatpush1.bf16.msra.mxu0 0
  %105 = vmatprep.subr.bf16.mxu0 0
  %106 = vmatpush1.bf16.msra.mxu0 0
  %107 = vmatprep.subr.bf16.mxu0 0
  %108 = vmatpush1.bf16.msra.mxu0 0
  %109 = vmatprep.subr.bf16.mxu0 0
  %110 = vmatpush1.bf16.msra.mxu0 0
  %111 = vmatprep.subr.bf16.mxu0 0
  %112 = vmatpush1.bf16.msra.mxu0 0
  %113 = vmatprep.mubr.bf16.mxu0 0
  %114 = vmatmul.mubr.bf16.gmra.mrb[0].mxu0 %v69
  %v115 = vpop.f32.mrb[0].mxu0
  %v116 = vadd.f32 0.0, %v115
  %v117 = vpop.f32.mrb[0].mxu0
  %v118 = vadd.f32 0.0, %v117
  %v119 = vpop.f32.mrb[0].mxu0
  %v120 = vadd.f32 0.0, %v119
  %v121 = vpop.f32.mrb[0].mxu0
  %v122 = vadd.f32 0.0, %v121
  %123 = vmatprep.mubr.bf16.mxu0 0
  %124 = vmatmul.mubr.bf16.gmra.mrb[0].mxu0 %v72
  %v125 = vpop.f32.mrb[0].mxu0
  %v126 = vadd.f32 0.0, %v125
  %v127 = vpop.f32.mrb[0].mxu0
  %v128 = vadd.f32 0.0, %v127
  %v129 = vpop.f32.mrb[0].mxu0
  %v130 = vadd.f32 0.0, %v129
  %v131 = vpop.f32.mrb[0].mxu0
  %v132 = vadd.f32 0.0, %v131
  %133 = vdwg.mxu0
  %vm134 = vcmask 654336
  %v136 = vsel %vm134, %v45, 0
  %v139 = vsel %vm134, %v46, 0
  %141 = vmatprep.subr.bf16.mxu0 %v48
  %142 = vmatpush1.bf16.msra.mxu0 %v47
  %143 = vmatprep.subr.bf16.mxu0 %v50
  %144 = vmatpush1.bf16.msra.mxu0 %v49
  %145 = vmatprep.subr.bf16.mxu0 %v52
  %146 = vmatpush1.bf16.msra.mxu0 %v51
  %147 = vmatprep.subr.bf16.mxu0 %v54
  %148 = vmatpush1.bf16.msra.mxu0 %v53
  %149 = vmatprep.subr.bf16.mxu0 %v56
  %150 = vmatpush1.bf16.msra.mxu0 %v55
  %151 = vmatprep.subr.bf16.mxu0 0
  %152 = vmatpush1.bf16.msra.mxu0 0
  %153 = vmatprep.subr.bf16.mxu0 0
  %154 = vmatpush1.bf16.msra.mxu0 0
  %155 = vmatprep.subr.bf16.mxu0 0
  %156 = vmatpush1.bf16.msra.mxu0 0
  %157 = vmatprep.subr.bf16.mxu0 0
  %158 = vmatpush1.bf16.msra.mxu0 0
  %159 = vmatprep.subr.bf16.mxu0 0
  %160 = vmatpush1.bf16.msra.mxu0 0
  %161 = vmatprep.subr.bf16.mxu0 0
  %162 = vmatpush1.bf16.msra.mxu0 0
  %163 = vmatprep.subr.bf16.mxu0 0
  %164 = vmatpush1.bf16.msra.mxu0 0
  %165 = vmatprep.subr.bf16.mxu0 0
  %166 = vmatpush1.bf16.msra.mxu0 0
  %167 = vmatprep.subr.bf16.mxu0 0
  %168 = vmatpush1.bf16.msra.mxu0 0
  %169 = vmatprep.subr.bf16.mxu0 0
  %170 = vmatpush1.bf16.msra.mxu0 0
  %171 = vmatprep.subr.bf16.mxu0 0
  %172 = vmatpush1.bf16.msra.mxu0 0
  %173 = vmatprep.mubr.bf16.mxu0 0
  %174 = vmatmul.mubr.bf16.gmra.mrb[0].mxu0 %v136
  %v175 = vpop.f32.mrb[0].mxu0
  %v176 = vadd.f32 %v116, %v175
  %v177 = vpop.f32.mrb[0].mxu0
  %v178 = vadd.f32 %v118, %v177
  %v179 = vpop.f32.mrb[0].mxu0
  %v180 = vadd.f32 %v120, %v179
  %v181 = vpop.f32.mrb[0].mxu0
  %v182 = vadd.f32 %v122, %v181
  %183 = vmatprep.mubr.bf16.mxu0 0
  %184 = vmatmul.mubr.bf16.gmra.mrb[0].mxu0 %v139
  %v185 = vpop.f32.mrb[0].mxu0
  %v186 = vadd.f32 %v126, %v185
  %v187 = vpop.f32.mrb[0].mxu0
  %v188 = vadd.f32 %v128, %v187
  %v189 = vpop.f32.mrb[0].mxu0
  %v190 = vadd.f32 %v130, %v189
  %v191 = vpop.f32.mrb[0].mxu0
  %v192 = vadd.f32 %v132, %v191
  %193 = vdwg.mxu0
  %v194 = vld [vmem:[%s4] sm:$0x3]
  %v196 = vlaneseq
  %v197 = vshrl.u32 %v196, 7
  %v198 = vsub.s32 0, %v197
  %v199 = vrot.slane %v194, %v198
  %v200 = vlaneseq
  %v201 = vshrl.u32 %v200, 7
  %v202 = vsub.s32 1, %v201
  %v203 = vrot.slane %v194, %v202
  %v206 = vadd.f32 %v176, %v199
  %v207 = vadd.f32 %v178, %v203
  %v208 = vadd.f32 %v180, %v199
  %v209 = vadd.f32 %v182, %v203
  %v210 = vadd.f32 %v186, %v199
  %v211 = vadd.f32 %v188, %v203
  %v212 = vadd.f32 %v190, %v199
  %v213 = vadd.f32 %v192, %v203
  %214 = vst [vmem:[%s5] sm:$0xff] %v206
  %vm215 = vcmask 130048
  %216 = vst.msk [vmem:[%s5 + $0x8] sm:$0xff] %vm215, %v207
  %217 = vst [vmem:[%s5 + $0x10] sm:$0xff] %v208
  %218 = vst.msk [vmem:[%s5 + $0x18] sm:$0xff] %vm215, %v209
  %219 = vst [vmem:[%s5 + $0x20] sm:$0xff] %v210
  %220 = vst.msk [vmem:[%s5 + $0x28] sm:$0xff] %vm215, %v211
  %221 = vst [vmem:[%s5 + $0x30] sm:$0xff] %v212
  %222 = vst.msk [vmem:[%s5 + $0x38] sm:$0xff] %vm215, %v213
  // Predicated region
  $region22: #{cross_attention_pallas.5} parent=0 // pred_check
    _
  $region23: #{cross_attention_pallas.5} parent=0 // pred_check_branch
    %224 = sbr.rel (0) target = $region25
  $region24: #{cross_attention_pallas.5} parent=0 // pred_region
    _
  $region25: #{cross_attention_pallas.5} parent=0 // pred_fallthru
    _
  // Predicated region
  $region26: #{cross_attention_pallas.5} parent=0 // pred_check
    _
  $region27: #{cross_attention_pallas.5} parent=0 // pred_check_branch
    %226 = sbr.rel (0) target = $region29
  $region28: #{cross_attention_pallas.5} parent=0 // pred_region
    _
  $region29: #{cross_attention_pallas.5} parent=0 // pred_fallthru
    _

</llo_original>
